<compile_context>
chip_gen: v7x
topology: tpu7x:2x2x1
jax: 0.10.0
libtpu: 0.0.40
codegen_flags: <defaults>
</compile_context>

<pallas_src>
import jax
import jax.numpy as jnp
from jax.experimental import pallas as pl
from jax.experimental.pallas import tpu as pltpu

# --- small synthetic hyperparameters ---
VOCAB = 128
D_MODEL = 64
N_HEAD = 2
D_HEAD = D_MODEL // N_HEAD
FFN_HALF = 128
N_LAYER = 2
LORA_R = 8            # use_qwenvl_lora=8
LORA_ALPHA = 16       # 2 * use_qwenvl_lora
IGNORE_INDEX = -100


# ---------------- single fused kernel: all decoder layers + head + loss ----------------
# grid = (N_LAYER,), "arbitrary".  Residual stream lives in VMEM scratch.
def _fused_forward_kernel(h0_ref, bias_ref, cos_ref, sin_ref, rot_ref, lbl_ref,
                          ln1_ref, wqkv_ref, bqkv_ref, wo_ref,
                          ln2_ref, w12_ref, wp_ref,
                          lnf_ref, wlm_ref,
                          logits_ref, loss_ref,
                          h_scr, attn_scr):
    l = pl.program_id(0)
    D, Dh, F = D_MODEL, D_HEAD, FFN_HALF

    @pl.when(l == 0)
    def _():
        h_scr[...] = h0_ref[...]              # load embeddings into the resident stream

    h = h_scr[...]                            # (BL, D) f32 residual stream (VMEM-resident)

    # ---- attention sub-block: RMSNorm -> QKV (bf16 MXU, f32 acc) -> RoPE -> attn
    var = jnp.mean(h * h, axis=-1, keepdims=True)
    xb = (h * jax.lax.rsqrt(var + 1e-6) * ln1_ref[0]).astype(jnp.bfloat16)
    qkv = jnp.dot(xb, wqkv_ref[0], preferred_element_type=jnp.float32) + bqkv_ref[0]

    qk = qkv[:, :2 * D]                       # (BL, 2D)  [q_h0|q_h1|k_h0|k_h1]
    v = qkv[:, 2 * D:]                        # (BL, D)
    # RoPE: rotate-half = one (BL,2D)x(2D,2D) signed block-diagonal permutation
    # matmul (MXU, exact since each column has a single +/-1) — no slices/concats.
    # TODO(synk): at real D use pltpu.roll on (rows,H,Dh) instead of a matmul.
    qk = qk * cos_ref[...] + jnp.dot(qk, rot_ref[...],
                                     preferred_element_type=jnp.float32) * sin_ref[...]

    bias = bias_ref[...]                      # (BL, BL) causal+pad+batch-block bias (hoisted)
    for hh in range(N_HEAD):                  # static unroll (N_HEAD=2)
        qh = qk[:, hh * Dh:(hh + 1) * Dh]     # 1/sqrt(Dh) already folded into q tables
        kh = qk[:, D + hh * Dh: D + (hh + 1) * Dh]
        vh = v[:, hh * Dh:(hh + 1) * Dh]
        s = jax.lax.dot_general(qh, kh, (((1,), (1,)), ((), ())),
                                preferred_element_type=jnp.float32) + bias
        m = jnp.max(s, axis=-1, keepdims=True)
        p = jnp.exp(s - m)
        p = p * pl.reciprocal(jnp.sum(p, axis=-1, keepdims=True), approx=True)
        # head outputs go into a VMEM scratch slab instead of a concat
        attn_scr[:, hh * Dh:(hh + 1) * Dh] = jnp.dot(
            p, vh, preferred_element_type=jnp.float32)

    attn = attn_scr[...].astype(jnp.bfloat16)
    h = h + jnp.dot(attn, wo_ref[0], preferred_element_type=jnp.float32)

    # ---- MLP sub-block: c_proj( w1(x) * silu(w2(x)) ), w1||w2 fused (lane-dense 2F)
    var2 = jnp.mean(h * h, axis=-1, keepdims=True)
    x2 = (h * jax.lax.rsqrt(var2 + 1e-6) * ln2_ref[0]).astype(jnp.bfloat16)
    a12 = jnp.dot(x2, w12_ref[0], preferred_element_type=jnp.float32)   # (BL, 2F)
    a1, a2 = a12[:, :F], a12[:, F:]
    hid = (a1 * (a2 * jax.nn.sigmoid(a2))).astype(jnp.bfloat16)
    h = h + jnp.dot(hid, wp_ref[0], preferred_element_type=jnp.float32)
    h_scr[...] = h                            # carry residual stream to next layer step

    # ---- fused final RMSNorm + lm_head + shifted cross-entropy (last step only)
    @pl.when(l == pl.num_programs(0) - 1)
    def _():
        varf = jnp.mean(h * h, axis=-1, keepdims=True)
        xf = (h * jax.lax.rsqrt(varf + 1e-6) * lnf_ref[...]).astype(jnp.bfloat16)
        logits = jnp.dot(xf, wlm_ref[...], preferred_element_type=jnp.float32)  # (BL, V)
        logits_ref[...] = logits.astype(jnp.bfloat16)        # bf16 writeback (model dtype)

        # TODO(synk): at real Qwen vocab (~152k) tile the vocab dim with an online
        # logsumexp and gather the picked logit via a label-indexed pl.ds instead
        # of the iota-compare below.
        lbl = lbl_ref[...]                                   # (BL, 1) int32, pre-shifted
        m = jnp.max(logits, axis=-1, keepdims=True)
        lse = jnp.log(jnp.sum(jnp.exp(logits - m), axis=-1, keepdims=True)) + m
        col = jax.lax.broadcasted_iota(jnp.int32, logits.shape, 1)
        picked = jnp.sum(jnp.where(col == lbl, logits, 0.0), axis=-1, keepdims=True)
        valid = (lbl != IGNORE_INDEX).astype(jnp.float32)
        nll = jnp.sum((lse - picked) * valid, keepdims=True)  # (1, 1)
        cnt = jnp.sum(valid, keepdims=True)                   # (1, 1)
        loss_ref[...] = nll / jnp.maximum(cnt, 1.0)


def fused_forward(params, h0, bias, cos_bl, sin_bl, rot, shifted_labels):
    BL, D = h0.shape
    V, F = VOCAB, FFN_HALF
    return pl.pallas_call(
        _fused_forward_kernel,
        out_shape=(jax.ShapeDtypeStruct((BL, V), jnp.bfloat16),   # logits (lane-dense)
                   jax.ShapeDtypeStruct((1, 1), jnp.float32)),    # loss scalar
        grid=(N_LAYER,),
        in_specs=[
            pl.BlockSpec((BL, D), lambda l: (0, 0)),              # embeddings (step 0 only)
            pl.BlockSpec((BL, BL), lambda l: (0, 0)),             # additive attn bias
            pl.BlockSpec((BL, 2 * D), lambda l: (0, 0)),          # RoPE cos (scale folded)
            pl.BlockSpec((BL, 2 * D), lambda l: (0, 0)),          # RoPE sin
            pl.BlockSpec((2 * D, 2 * D), lambda l: (0, 0)),       # rotate-half perm matrix
            pl.BlockSpec((BL, 1), lambda l: (0, 0)),              # shifted labels
            pl.BlockSpec((1, 1, D), lambda l: (l, 0, 0)),         # ln1      (per layer)
            pl.BlockSpec((1, D, 3 * D), lambda l: (l, 0, 0)),     # c_attn W (bf16)
            pl.BlockSpec((1, 1, 3 * D), lambda l: (l, 0, 0)),     # c_attn b
            pl.BlockSpec((1, D, D), lambda l: (l, 0, 0)),         # attn c_proj W (bf16)
            pl.BlockSpec((1, 1, D), lambda l: (l, 0, 0)),         # ln2
            pl.BlockSpec((1, D, 2 * F), lambda l: (l, 0, 0)),     # w1||w2 fused (bf16)
            pl.BlockSpec((1, F, D), lambda l: (l, 0, 0)),         # mlp c_proj (bf16)
            pl.BlockSpec((1, D), lambda l: (0, 0)),               # ln_f
            pl.BlockSpec((D, V), lambda l: (0, 0)),               # lm_head (bf16)
        ],
        out_specs=(pl.BlockSpec((BL, V), lambda l: (0, 0)),
                   pl.BlockSpec((1, 1), lambda l: (0, 0))),
        scratch_shapes=[pltpu.VMEM((BL, D), jnp.float32),         # residual stream
                        pltpu.VMEM((BL, D), jnp.float32)],        # attention output slab
        compiler_params=pltpu.CompilerParams(
            dimension_semantics=("arbitrary",)),                  # layer axis is sequential
    )(h0, bias, cos_bl, sin_bl, rot, shifted_labels,
      params["ln1"], params["c_attn_w"], params["c_attn_b"], params["attn_proj_w"],
      params["ln2"], params["w12"], params["mlp_proj_w"],
      params["ln_f"], params["lm_head"])


# ---------------- glue (RoPE tables, mask, parameter setup, wiring) ----------------
def rope_tables(B, L):
    half = D_HEAD // 2
    inv = 1.0 / (10000.0 ** (jnp.arange(0, D_HEAD, 2, dtype=jnp.float32) / D_HEAD))
    freqs = jnp.outer(jnp.arange(L, dtype=jnp.float32), inv)       # (L, Dh/2)
    emb = jnp.concatenate([freqs, freqs], axis=-1)                 # (L, Dh)
    cos_h, sin_h = jnp.cos(emb), jnp.sin(emb)
    cos_d = jnp.tile(cos_h, (1, N_HEAD))                           # (L, D) head-tiled
    sin_d = jnp.tile(sin_h, (1, N_HEAD))
    scale = D_HEAD ** -0.5                                         # fold score scale into q
    cos_qk = jnp.concatenate([cos_d * scale, cos_d], axis=-1)      # (L, 2D) for [q|k]
    sin_qk = jnp.concatenate([sin_d * scale, sin_d], axis=-1)
    cos_bl = jnp.tile(cos_qk, (B, 1))                              # (B*L, 2D)
    sin_bl = jnp.tile(sin_qk, (B, 1))
    # signed rotate-half permutation, block-diagonal per 32-wide head slice of [q|k]
    j = jnp.arange(D_HEAD)
    rows = jnp.where(j < half, j + half, j - half)
    vals = jnp.where(j < half, -1.0, 1.0).astype(jnp.float32)
    p_head = jnp.zeros((D_HEAD, D_HEAD), jnp.float32).at[rows, j].set(vals)
    rot = jnp.kron(jnp.eye(2 * N_HEAD, dtype=jnp.float32), p_head)  # (2D, 2D)
    return cos_bl, sin_bl, rot


def init_params(key):
    def normal(k, shape, scale=0.02):
        return scale * jax.random.normal(k, shape, dtype=jnp.float32)

    def lora_merge(w, k):
        # merged LoRA: W_eff = W + (alpha/r) * A @ B (random A,B, merged in f32)
        ka, kb = jax.random.split(k)
        A = normal(ka, (w.shape[0], LORA_R))
        Bm = normal(kb, (LORA_R, w.shape[1]))
        return w + (LORA_ALPHA / LORA_R) * (A @ Bm)

    bf16 = lambda w: w.astype(jnp.bfloat16)
    keys = iter(jax.random.split(key, 8 + 16 * N_LAYER))
    params = {
        "wte": normal(next(keys), (VOCAB, D_MODEL)),
        "ln_f": jnp.ones((1, D_MODEL), jnp.float32),
        "lm_head": bf16(normal(next(keys), (D_MODEL, VOCAB))),
    }
    ln1, ln2, wqkv, bqkv, wo, w12, wp = [], [], [], [], [], [], []
    for _ in range(N_LAYER):
        ln1.append(jnp.ones((1, D_MODEL), jnp.float32))
        ln2.append(jnp.ones((1, D_MODEL), jnp.float32))
        wqkv.append(bf16(lora_merge(normal(next(keys), (D_MODEL, 3 * D_MODEL)), next(keys))))
        bqkv.append(normal(next(keys), (1, 3 * D_MODEL)))
        wo.append(bf16(lora_merge(normal(next(keys), (D_MODEL, D_MODEL)), next(keys))))
        w1 = lora_merge(normal(next(keys), (D_MODEL, FFN_HALF)), next(keys))
        w2 = lora_merge(normal(next(keys), (D_MODEL, FFN_HALF)), next(keys))
        w12.append(bf16(jnp.concatenate([w1, w2], axis=1)))     # fused, lane-dense 2F
        wp.append(bf16(normal(next(keys), (FFN_HALF, D_MODEL))))
    params["ln1"] = jnp.stack(ln1)            # (N_LAYER, 1, D)
    params["ln2"] = jnp.stack(ln2)
    params["c_attn_w"] = jnp.stack(wqkv)      # (N_LAYER, D, 3D) bf16
    params["c_attn_b"] = jnp.stack(bqkv)      # (N_LAYER, 1, 3D)
    params["attn_proj_w"] = jnp.stack(wo)     # (N_LAYER, D, D)  bf16
    params["w12"] = jnp.stack(w12)            # (N_LAYER, D, 2F) bf16
    params["mlp_proj_w"] = jnp.stack(wp)      # (N_LAYER, F, D)  bf16
    return params


def qwenvl_vqa_forward(params, input_ids, attention_mask, labels):
    """Mirrors QwenVLVQAModel.forward: returns (loss, logits)."""
    B, L = input_ids.shape
    BL = B * L

    # TODO(synk): the real model runs a frozen ViT visual encoder on image-path
    # tokens decoded back through the tokenizer (file/tokenizer I/O) — no Pallas
    # equivalent; all tokens are treated as text tokens here.
    h0 = jnp.take(params["wte"], input_ids, axis=0).reshape(BL, D_MODEL)

    # causal + key-padding + block-diagonal(batch) additive bias, built ONCE
    # (hoisted out of the per-layer kernel body).
    bi = jnp.arange(BL, dtype=jnp.int32) // L
    pi = jnp.arange(BL, dtype=jnp.int32) % L
    kvalid = attention_mask.reshape(BL) > 0
    allowed = (bi[:, None] == bi[None, :]) & (pi[None, :] <= pi[:, None]) & kvalid[None, :]
    bias = jnp.where(allowed, 0.0, -1e30).astype(jnp.float32)

    cos_bl, sin_bl, rot = rope_tables(B, L)

    # HF shifted causal-LM CE: position l scored against labels[l+1]; last pos ignored
    shifted = jnp.concatenate(
        [labels[:, 1:], jnp.full((B, 1), IGNORE_INDEX, labels.dtype)], axis=1)
    shifted = shifted.reshape(BL, 1).astype(jnp.int32)

    logits, loss = fused_forward(params, h0, bias, cos_bl, sin_bl, rot, shifted)
    return loss[0, 0], logits.reshape(B, L, VOCAB)


if __name__ == "__main__":
    B, L = 2, 16
    key = jax.random.PRNGKey(0)
    kp, ki = jax.random.split(key)
    params = init_params(kp)

    input_ids = jax.random.randint(ki, (B, L), 0, VOCAB, dtype=jnp.int32)
    # right-padded batch: last 3 positions of sample 1 are padding
    attention_mask = jnp.ones((B, L), jnp.int32).at[1, L - 3:].set(0)
    labels = jnp.where(attention_mask > 0, input_ids, IGNORE_INDEX).astype(jnp.int32)

    loss, logits = jax.jit(qwenvl_vqa_forward)(params, input_ids, attention_mask, labels)
    jax.block_until_ready((loss, logits))
    assert logits.shape == (B, L, VOCAB)
    assert bool(jnp.isfinite(loss))
    print("KERNEL_OK")
</pallas_src>

<mosaic_0001>
module attributes {stable_mosaic.version = 11 : i64} {
  func.func @_fused_forward_kernel(%arg0: i32, %arg1: memref<32x64xf32, #tpu.memory_space<vmem>>, %arg2: memref<32x32xf32, #tpu.memory_space<vmem>>, %arg3: memref<32x128xf32, #tpu.memory_space<vmem>>, %arg4: memref<32x128xf32, #tpu.memory_space<vmem>>, %arg5: memref<128x128xf32, #tpu.memory_space<vmem>>, %arg6: memref<32x1xi32, #tpu.memory_space<vmem>>, %arg7: memref<1x1x64xf32, #tpu.memory_space<vmem>>, %arg8: memref<1x64x192xbf16, #tpu.memory_space<vmem>>, %arg9: memref<1x1x192xf32, #tpu.memory_space<vmem>>, %arg10: memref<1x64x64xbf16, #tpu.memory_space<vmem>>, %arg11: memref<1x1x64xf32, #tpu.memory_space<vmem>>, %arg12: memref<1x64x256xbf16, #tpu.memory_space<vmem>>, %arg13: memref<1x128x64xbf16, #tpu.memory_space<vmem>>, %arg14: memref<1x64xf32, #tpu.memory_space<vmem>>, %arg15: memref<64x128xbf16, #tpu.memory_space<vmem>>, %arg16: memref<32x128xbf16, #tpu.memory_space<vmem>>, %arg17: memref<1x1xf32, #tpu.memory_space<vmem>>, %arg18: memref<32x64xf32, #tpu.memory_space<vmem>>, %arg19: memref<32x64xf32, #tpu.memory_space<vmem>>) attributes {dimension_semantics = [#tpu.dimension_semantics<arbitrary>], iteration_bounds = array<i64: 2>, scalar_prefetch = 0 : i64, scratch_operands = 2 : i64, tpu.core_type = #tpu.core_type<tc>, window_params = [{pipeline_mode = #tpu.pipeline_mode<synchronous>, transform_indices = @transform_0, window_bounds = array<i64: 32, 64>}, {pipeline_mode = #tpu.pipeline_mode<synchronous>, transform_indices = @transform_1, window_bounds = array<i64: 32, 32>}, {pipeline_mode = #tpu.pipeline_mode<synchronous>, transform_indices = @transform_2, window_bounds = array<i64: 32, 128>}, {pipeline_mode = #tpu.pipeline_mode<synchronous>, transform_indices = @transform_3, window_bounds = array<i64: 32, 128>}, {pipeline_mode = #tpu.pipeline_mode<synchronous>, transform_indices = @transform_4, window_bounds = array<i64: 128, 128>}, {pipeline_mode = #tpu.pipeline_mode<synchronous>, transform_indices = @transform_5, window_bounds = array<i64: 32, 1>}, {transform_indices = @transform_6, window_bounds = array<i64: 1, 1, 64>}, {transform_indices = @transform_7, window_bounds = array<i64: 1, 64, 192>}, {transform_indices = @transform_8, window_bounds = array<i64: 1, 1, 192>}, {transform_indices = @transform_9, window_bounds = array<i64: 1, 64, 64>}, {transform_indices = @transform_10, window_bounds = array<i64: 1, 1, 64>}, {transform_indices = @transform_11, window_bounds = array<i64: 1, 64, 256>}, {transform_indices = @transform_12, window_bounds = array<i64: 1, 128, 64>}, {pipeline_mode = #tpu.pipeline_mode<synchronous>, transform_indices = @transform_13, window_bounds = array<i64: 1, 64>}, {pipeline_mode = #tpu.pipeline_mode<synchronous>, transform_indices = @transform_14, window_bounds = array<i64: 64, 128>}, {pipeline_mode = #tpu.pipeline_mode<synchronous>, transform_indices = @transform_15, window_bounds = array<i64: 32, 128>}, {pipeline_mode = #tpu.pipeline_mode<synchronous>, transform_indices = @transform_16, window_bounds = array<i64: 1, 1>}]} {
    %c0_i32 = arith.constant 0 : i32
    %0 = arith.cmpi eq, %arg0, %c0_i32 : i32
    %1 = arith.extui %0 : i1 to i32
    %c0_i32_0 = arith.constant 0 : i32
    %2 = arith.cmpi ne, %1, %c0_i32_0 : i32
    scf.if %2 {
      %c0_58 = arith.constant 0 : index
      %c0_59 = arith.constant 0 : index
      %112 = vector.load %arg1[%c0_58, %c0_59] : memref<32x64xf32, #tpu.memory_space<vmem>>, vector<32x64xf32>
      %c0_60 = arith.constant 0 : index
      %c0_61 = arith.constant 0 : index
      %113 = vector.load %arg18[%c0_60, %c0_61] : memref<32x64xf32, #tpu.memory_space<vmem>>, vector<32x64xf32>
      tpu.vector_store %arg18[%c0_60, %c0_61], %112 {strides = array<i32>} : memref<32x64xf32, #tpu.memory_space<vmem>>, vector<32x64xf32>,
    } else {
    }
    %c0 = arith.constant 0 : index
    %c0_1 = arith.constant 0 : index
    %3 = vector.load %arg18[%c0, %c0_1] : memref<32x64xf32, #tpu.memory_space<vmem>>, vector<32x64xf32>
    %4 = arith.mulf %3, %3 : vector<32x64xf32>
    %cst = arith.constant dense<0.000000e+00> : vector<32xf32>
    %5 = vector.multi_reduction <add>, %4, %cst [1] : vector<32x64xf32> to vector<32xf32>
    %6 = vector.shape_cast %5 : vector<32xf32> to vector<32x1xf32>
    %cst_2 = arith.constant 6.400000e+01 : f32
    %7 = vector.broadcast %cst_2 : f32 to vector<32x1xf32>
    %8 = arith.divf %6, %7 : vector<32x1xf32>
    %cst_3 = arith.constant 9.99999997E-7 : f32
    %9 = vector.broadcast %cst_3 : f32 to vector<32x1xf32>
    %10 = arith.addf %8, %9 : vector<32x1xf32>
    %11 = math.rsqrt %10 : vector<32x1xf32>
    %12 = vector.broadcast %11 : vector<32x1xf32> to vector<32x64xf32>
    %13 = arith.mulf %3, %12 : vector<32x64xf32>
    %c0_4 = arith.constant 0 : index
    %c0_5 = arith.constant 0 : index
    %c0_6 = arith.constant 0 : index
    %14 = vector.load %arg7[%c0_4, %c0_5, %c0_6] : memref<1x1x64xf32, #tpu.memory_space<vmem>>, vector<1x1x64xf32>
    %15 = vector.shape_cast %14 : vector<1x1x64xf32> to vector<1x64xf32>
    %16 = vector.broadcast %15 : vector<1x64xf32> to vector<32x64xf32>
    %17 = arith.mulf %13, %16 : vector<32x64xf32>
    %18 = arith.truncf %17 : vector<32x64xf32> to vector<32x64xbf16>
    %c0_7 = arith.constant 0 : index
    %c0_8 = arith.constant 0 : index
    %c0_9 = arith.constant 0 : index
    %19 = vector.load %arg8[%c0_7, %c0_8, %c0_9] : memref<1x64x192xbf16, #tpu.memory_space<vmem>>, vector<1x64x192xbf16>
    %20 = vector.shape_cast %19 : vector<1x64x192xbf16> to vector<64x192xbf16>
    %cst_10 = arith.constant dense<0.000000e+00> : vector<32x192xf32>
    %21 = tpu.matmul %18, %20, %cst_10 {dimension_numbers = #tpu.dot_dimension_numbers<[1], [0], [0], [1], [0, 0, 1, 1], [], []>} : vector<32x64xbf16>, vector<64x192xbf16>, vector<32x192xf32> -> vector<32x192xf32>
    %c0_11 = arith.constant 0 : index
    %c0_12 = arith.constant 0 : index
    %c0_13 = arith.constant 0 : index
    %22 = vector.load %arg9[%c0_11, %c0_12, %c0_13] : memref<1x1x192xf32, #tpu.memory_space<vmem>>, vector<1x1x192xf32>
    %23 = vector.shape_cast %22 : vector<1x1x192xf32> to vector<1x192xf32>
    %24 = vector.broadcast %23 : vector<1x192xf32> to vector<32x192xf32>
    %25 = arith.addf %21, %24 : vector<32x192xf32>
    %26 = vector.extract_strided_slice %25 {offsets = [0, 0], sizes = [32, 128], strides = [1, 1]} : vector<32x192xf32> to vector<32x128xf32>
    %27 = vector.extract_strided_slice %25 {offsets = [0, 128], sizes = [32, 64], strides = [1, 1]} : vector<32x192xf32> to vector<32x64xf32>
    %c0_14 = arith.constant 0 : index
    %c0_15 = arith.constant 0 : index
    %28 = vector.load %arg3[%c0_14, %c0_15] : memref<32x128xf32, #tpu.memory_space<vmem>>, vector<32x128xf32>
    %29 = arith.mulf %26, %28 : vector<32x128xf32>
    %c0_16 = arith.constant 0 : index
    %c0_17 = arith.constant 0 : index
    %30 = vector.load %arg5[%c0_16, %c0_17] : memref<128x128xf32, #tpu.memory_space<vmem>>, vector<128x128xf32>
    %cst_18 = arith.constant dense<0.000000e+00> : vector<32x128xf32>
    %31 = tpu.matmul %26, %30, %cst_18 {dimension_numbers = #tpu.dot_dimension_numbers<[1], [0], [0], [1], [0, 0, 1, 1], [], []>} : vector<32x128xf32>, vector<128x128xf32>, vector<32x128xf32> -> vector<32x128xf32>
    %c0_19 = arith.constant 0 : index
    %c0_20 = arith.constant 0 : index
    %32 = vector.load %arg4[%c0_19, %c0_20] : memref<32x128xf32, #tpu.memory_space<vmem>>, vector<32x128xf32>
    %33 = arith.mulf %31, %32 : vector<32x128xf32>
    %34 = arith.addf %29, %33 : vector<32x128xf32>
    %c0_21 = arith.constant 0 : index
    %c0_22 = arith.constant 0 : index
    %35 = vector.load %arg2[%c0_21, %c0_22] : memref<32x32xf32, #tpu.memory_space<vmem>>, vector<32x32xf32>
    %36 = vector.extract_strided_slice %34 {offsets = [0, 0], sizes = [32, 32], strides = [1, 1]} : vector<32x128xf32> to vector<32x32xf32>
    %37 = vector.extract_strided_slice %34 {offsets = [0, 64], sizes = [32, 32], strides = [1, 1]} : vector<32x128xf32> to vector<32x32xf32>
    %38 = vector.extract_strided_slice %27 {offsets = [0, 0], sizes = [32, 32], strides = [1, 1]} : vector<32x64xf32> to vector<32x32xf32>
    %cst_23 = arith.constant dense<0.000000e+00> : vector<32x32xf32>
    %39 = tpu.matmul %36, %37, %cst_23 {dimension_numbers = #tpu.dot_dimension_numbers<[1], [1], [0], [0], [0, 0, 1, 0], [], []>} : vector<32x32xf32>, vector<32x32xf32>, vector<32x32xf32> -> vector<32x32xf32>
    %40 = arith.addf %39, %35 : vector<32x32xf32>
    %cst_24 = arith.constant dense<0xFF800000> : vector<32xf32>
    %41 = vector.multi_reduction <maximumf>, %40, %cst_24 [1] : vector<32x32xf32> to vector<32xf32>
    %42 = vector.shape_cast %41 : vector<32xf32> to vector<32x1xf32>
    %43 = vector.broadcast %42 : vector<32x1xf32> to vector<32x32xf32>
    %44 = arith.subf %40, %43 : vector<32x32xf32>
    %45 = math.exp %44 : vector<32x32xf32>
    %cst_25 = arith.constant dense<0.000000e+00> : vector<32xf32>
    %46 = vector.multi_reduction <add>, %45, %cst_25 [1] : vector<32x32xf32> to vector<32xf32>
    %47 = vector.shape_cast %46 : vector<32xf32> to vector<32x1xf32>
    %48 = tpu.reciprocal %47 {approx = true} : vector<32x1xf32> -> vector<32x1xf32>
    %49 = vector.broadcast %48 : vector<32x1xf32> to vector<32x32xf32>
    %50 = arith.mulf %45, %49 : vector<32x32xf32>
    %cst_26 = arith.constant dense<0.000000e+00> : vector<32x32xf32>
    %51 = tpu.matmul %50, %38, %cst_26 {dimension_numbers = #tpu.dot_dimension_numbers<[1], [0], [0], [1], [0, 0, 1, 1], [], []>} : vector<32x32xf32>, vector<32x32xf32>, vector<32x32xf32> -> vector<32x32xf32>
    %c0_27 = arith.constant 0 : index
    %c0_28 = arith.constant 0 : index
    %52 = vector.load %arg19[%c0_27, %c0_28] : memref<32x64xf32, #tpu.memory_space<vmem>>, vector<32x32xf32>
    tpu.vector_store %arg19[%c0_27, %c0_28], %51 {strides = array<i32>} : memref<32x64xf32, #tpu.memory_space<vmem>>, vector<32x32xf32>,
    %53 = vector.extract_strided_slice %34 {offsets = [0, 32], sizes = [32, 32], strides = [1, 1]} : vector<32x128xf32> to vector<32x32xf32>
    %54 = vector.extract_strided_slice %34 {offsets = [0, 96], sizes = [32, 32], strides = [1, 1]} : vector<32x128xf32> to vector<32x32xf32>
    %55 = vector.extract_strided_slice %27 {offsets = [0, 32], sizes = [32, 32], strides = [1, 1]} : vector<32x64xf32> to vector<32x32xf32>
    %cst_29 = arith.constant dense<0.000000e+00> : vector<32x32xf32>
    %56 = tpu.matmul %53, %54, %cst_29 {dimension_numbers = #tpu.dot_dimension_numbers<[1], [1], [0], [0], [0, 0, 1, 0], [], []>} : vector<32x32xf32>, vector<32x32xf32>, vector<32x32xf32> -> vector<32x32xf32>
    %57 = arith.addf %56, %35 : vector<32x32xf32>
    %cst_30 = arith.constant dense<0xFF800000> : vector<32xf32>
    %58 = vector.multi_reduction <maximumf>, %57, %cst_30 [1] : vector<32x32xf32> to vector<32xf32>
    %59 = vector.shape_cast %58 : vector<32xf32> to vector<32x1xf32>
    %60 = vector.broadcast %59 : vector<32x1xf32> to vector<32x32xf32>
    %61 = arith.subf %57, %60 : vector<32x32xf32>
    %62 = math.exp %61 : vector<32x32xf32>
    %cst_31 = arith.constant dense<0.000000e+00> : vector<32xf32>
    %63 = vector.multi_reduction <add>, %62, %cst_31 [1] : vector<32x32xf32> to vector<32xf32>
    %64 = vector.shape_cast %63 : vector<32xf32> to vector<32x1xf32>
    %65 = tpu.reciprocal %64 {approx = true} : vector<32x1xf32> -> vector<32x1xf32>
    %66 = vector.broadcast %65 : vector<32x1xf32> to vector<32x32xf32>
    %67 = arith.mulf %62, %66 : vector<32x32xf32>
    %cst_32 = arith.constant dense<0.000000e+00> : vector<32x32xf32>
    %68 = tpu.matmul %67, %55, %cst_32 {dimension_numbers = #tpu.dot_dimension_numbers<[1], [0], [0], [1], [0, 0, 1, 1], [], []>} : vector<32x32xf32>, vector<32x32xf32>, vector<32x32xf32> -> vector<32x32xf32>
    %c0_33 = arith.constant 0 : index
    %c32 = arith.constant 32 : index
    %69 = vector.load %arg19[%c0_33, %c32] : memref<32x64xf32, #tpu.memory_space<vmem>>, vector<32x32xf32>
    tpu.vector_store %arg19[%c0_33, %c32], %68 {strides = array<i32>} : memref<32x64xf32, #tpu.memory_space<vmem>>, vector<32x32xf32>,
    %c0_34 = arith.constant 0 : index
    %c0_35 = arith.constant 0 : index
    %70 = vector.load %arg19[%c0_34, %c0_35] : memref<32x64xf32, #tpu.memory_space<vmem>>, vector<32x64xf32>
    %71 = arith.truncf %70 : vector<32x64xf32> to vector<32x64xbf16>
    %c0_36 = arith.constant 0 : index
    %c0_37 = arith.constant 0 : index
    %c0_38 = arith.constant 0 : index
    %72 = vector.load %arg10[%c0_36, %c0_37, %c0_38] : memref<1x64x64xbf16, #tpu.memory_space<vmem>>, vector<1x64x64xbf16>
    %73 = vector.shape_cast %72 : vector<1x64x64xbf16> to vector<64x64xbf16>
    %cst_39 = arith.constant dense<0.000000e+00> : vector<32x64xf32>
    %74 = tpu.matmul %71, %73, %cst_39 {dimension_numbers = #tpu.dot_dimension_numbers<[1], [0], [0], [1], [0, 0, 1, 1], [], []>} : vector<32x64xbf16>, vector<64x64xbf16>, vector<32x64xf32> -> vector<32x64xf32>
    %75 = arith.addf %3, %74 : vector<32x64xf32>
    %76 = arith.mulf %75, %75 : vector<32x64xf32>
    %cst_40 = arith.constant dense<0.000000e+00> : vector<32xf32>
    %77 = vector.multi_reduction <add>, %76, %cst_40 [1] : vector<32x64xf32> to vector<32xf32>
    %78 = vector.shape_cast %77 : vector<32xf32> to vector<32x1xf32>
    %cst_41 = arith.constant 6.400000e+01 : f32
    %79 = vector.broadcast %cst_41 : f32 to vector<32x1xf32>
    %80 = arith.divf %78, %79 : vector<32x1xf32>
    %cst_42 = arith.constant 9.99999997E-7 : f32
    %81 = vector.broadcast %cst_42 : f32 to vector<32x1xf32>
    %82 = arith.addf %80, %81 : vector<32x1xf32>
    %83 = math.rsqrt %82 : vector<32x1xf32>
    %84 = vector.broadcast %83 : vector<32x1xf32> to vector<32x64xf32>
    %85 = arith.mulf %75, %84 : vector<32x64xf32>
    %c0_43 = arith.constant 0 : index
    %c0_44 = arith.constant 0 : index
    %c0_45 = arith.constant 0 : index
    %86 = vector.load %arg11[%c0_43, %c0_44, %c0_45] : memref<1x1x64xf32, #tpu.memory_space<vmem>>, vector<1x1x64xf32>
    %87 = vector.shape_cast %86 : vector<1x1x64xf32> to vector<1x64xf32>
    %88 = vector.broadcast %87 : vector<1x64xf32> to vector<32x64xf32>
    %89 = arith.mulf %85, %88 : vector<32x64xf32>
    %90 = arith.truncf %89 : vector<32x64xf32> to vector<32x64xbf16>
    %c0_46 = arith.constant 0 : index
    %c0_47 = arith.constant 0 : index
    %c0_48 = arith.constant 0 : index
    %91 = vector.load %arg12[%c0_46, %c0_47, %c0_48] : memref<1x64x256xbf16, #tpu.memory_space<vmem>>, vector<1x64x256xbf16>
    %92 = vector.shape_cast %91 : vector<1x64x256xbf16> to vector<64x256xbf16>
    %cst_49 = arith.constant dense<0.000000e+00> : vector<32x256xf32>
    %93 = tpu.matmul %90, %92, %cst_49 {dimension_numbers = #tpu.dot_dimension_numbers<[1], [0], [0], [1], [0, 0, 1, 1], [], []>} : vector<32x64xbf16>, vector<64x256xbf16>, vector<32x256xf32> -> vector<32x256xf32>
    %94 = vector.extract_strided_slice %93 {offsets = [0, 0], sizes = [32, 128], strides = [1, 1]} : vector<32x256xf32> to vector<32x128xf32>
    %95 = vector.extract_strided_slice %93 {offsets = [0, 128], sizes = [32, 128], strides = [1, 1]} : vector<32x256xf32> to vector<32x128xf32>
    %96 = arith.negf %95 : vector<32x128xf32>
    %97 = math.exp %96 : vector<32x128xf32>
    %cst_50 = arith.constant 1.000000e+00 : f32
    %98 = vector.broadcast %cst_50 : f32 to vector<32x128xf32>
    %99 = arith.addf %98, %97 : vector<32x128xf32>
    %100 = arith.divf %98, %99 : vector<32x128xf32>
    %101 = arith.mulf %95, %100 : vector<32x128xf32>
    %102 = arith.mulf %94, %101 : vector<32x128xf32>
    %103 = arith.truncf %102 : vector<32x128xf32> to vector<32x128xbf16>
    %c0_51 = arith.constant 0 : index
    %c0_52 = arith.constant 0 : index
    %c0_53 = arith.constant 0 : index
    %104 = vector.load %arg13[%c0_51, %c0_52, %c0_53] : memref<1x128x64xbf16, #tpu.memory_space<vmem>>, vector<1x128x64xbf16>
    %105 = vector.shape_cast %104 : vector<1x128x64xbf16> to vector<128x64xbf16>
    %cst_54 = arith.constant dense<0.000000e+00> : vector<32x64xf32>
    %106 = tpu.matmul %103, %105, %cst_54 {dimension_numbers = #tpu.dot_dimension_numbers<[1], [0], [0], [1], [0, 0, 1, 1], [], []>} : vector<32x128xbf16>, vector<128x64xbf16>, vector<32x64xf32> -> vector<32x64xf32>
    %107 = arith.addf %75, %106 : vector<32x64xf32>
    %c0_55 = arith.constant 0 : index
    %c0_56 = arith.constant 0 : index
    %108 = vector.load %arg18[%c0_55, %c0_56] : memref<32x64xf32, #tpu.memory_space<vmem>>, vector<32x64xf32>
    tpu.vector_store %arg18[%c0_55, %c0_56], %107 {strides = array<i32>} : memref<32x64xf32, #tpu.memory_space<vmem>>, vector<32x64xf32>,
    %c1_i32 = arith.constant 1 : i32
    %109 = arith.cmpi eq, %arg0, %c1_i32 : i32
    %110 = arith.extui %109 : i1 to i32
    %c0_i32_57 = arith.constant 0 : i32
    %111 = arith.cmpi ne, %110, %c0_i32_57 : i32
    scf.if %111 {
      %112 = arith.mulf %107, %107 : vector<32x64xf32>
      %cst_58 = arith.constant dense<0.000000e+00> : vector<32xf32>
      %113 = vector.multi_reduction <add>, %112, %cst_58 [1] : vector<32x64xf32> to vector<32xf32>
      %114 = vector.shape_cast %113 : vector<32xf32> to vector<32x1xf32>
      %cst_59 = arith.constant 6.400000e+01 : f32
      %115 = vector.broadcast %cst_59 : f32 to vector<32x1xf32>
      %116 = arith.divf %114, %115 : vector<32x1xf32>
      %cst_60 = arith.constant 9.99999997E-7 : f32
      %117 = vector.broadcast %cst_60 : f32 to vector<32x1xf32>
      %118 = arith.addf %116, %117 : vector<32x1xf32>
      %119 = math.rsqrt %118 : vector<32x1xf32>
      %120 = vector.broadcast %119 : vector<32x1xf32> to vector<32x64xf32>
      %121 = arith.mulf %107, %120 : vector<32x64xf32>
      %c0_61 = arith.constant 0 : index
      %c0_62 = arith.constant 0 : index
      %122 = vector.load %arg14[%c0_61, %c0_62] : memref<1x64xf32, #tpu.memory_space<vmem>>, vector<1x64xf32>
      %123 = vector.broadcast %122 : vector<1x64xf32> to vector<32x64xf32>
      %124 = arith.mulf %121, %123 : vector<32x64xf32>
      %125 = arith.truncf %124 : vector<32x64xf32> to vector<32x64xbf16>
      %c0_63 = arith.constant 0 : index
      %c0_64 = arith.constant 0 : index
      %126 = vector.load %arg15[%c0_63, %c0_64] : memref<64x128xbf16, #tpu.memory_space<vmem>>, vector<64x128xbf16>
      %cst_65 = arith.constant dense<0.000000e+00> : vector<32x128xf32>
      %127 = tpu.matmul %125, %126, %cst_65 {dimension_numbers = #tpu.dot_dimension_numbers<[1], [0], [0], [1], [0, 0, 1, 1], [], []>} : vector<32x64xbf16>, vector<64x128xbf16>, vector<32x128xf32> -> vector<32x128xf32>
      %128 = arith.truncf %127 : vector<32x128xf32> to vector<32x128xbf16>
      %c0_66 = arith.constant 0 : index
      %c0_67 = arith.constant 0 : index
      %129 = vector.load %arg16[%c0_66, %c0_67] : memref<32x128xbf16, #tpu.memory_space<vmem>>, vector<32x128xbf16>
      tpu.vector_store %arg16[%c0_66, %c0_67], %128 {strides = array<i32>} : memref<32x128xbf16, #tpu.memory_space<vmem>>, vector<32x128xbf16>,
      %c0_68 = arith.constant 0 : index
      %c0_69 = arith.constant 0 : index
      %130 = vector.load %arg6[%c0_68, %c0_69] : memref<32x1xi32, #tpu.memory_space<vmem>>, vector<32x1xi32>
      %cst_70 = arith.constant dense<0xFF800000> : vector<32xf32>
      %131 = vector.multi_reduction <maximumf>, %127, %cst_70 [1] : vector<32x128xf32> to vector<32xf32>
      %132 = vector.shape_cast %131 : vector<32xf32> to vector<32x1xf32>
      %133 = vector.broadcast %132 : vector<32x1xf32> to vector<32x128xf32>
      %134 = arith.subf %127, %133 : vector<32x128xf32>
      %135 = math.exp %134 : vector<32x128xf32>
      %cst_71 = arith.constant dense<0.000000e+00> : vector<32xf32>
      %136 = vector.multi_reduction <add>, %135, %cst_71 [1] : vector<32x128xf32> to vector<32xf32>
      %137 = vector.shape_cast %136 : vector<32xf32> to vector<32x1xf32>
      %138 = math.log %137 : vector<32x1xf32>
      %139 = arith.addf %138, %132 : vector<32x1xf32>
      %140 = tpu.iota {dimensions = array<i32: 1>} : vector<32x128xi32>
      %141 = vector.broadcast %130 : vector<32x1xi32> to vector<32x128xi32>
      %142 = arith.cmpi eq, %140, %141 : vector<32x128xi32>
      %cst_72 = arith.constant 0.000000e+00 : f32
      %143 = vector.broadcast %cst_72 : f32 to vector<32x128xf32>
      %144 = arith.select %142, %127, %143 : vector<32x128xi1>, vector<32x128xf32>
      %cst_73 = arith.constant dense<0.000000e+00> : vector<32xf32>
      %145 = vector.multi_reduction <add>, %144, %cst_73 [1] : vector<32x128xf32> to vector<32xf32>
      %146 = vector.shape_cast %145 : vector<32xf32> to vector<32x1xf32>
      %c-100_i32 = arith.constant -100 : i32
      %147 = vector.broadcast %c-100_i32 : i32 to vector<32x1xi32>
      %148 = arith.cmpi ne, %130, %147 : vector<32x1xi32>
      %149 = arith.extui %148 : vector<32x1xi1> to vector<32x1xi32>
      %150 = arith.sitofp %149 : vector<32x1xi32> to vector<32x1xf32>
      %151 = arith.subf %139, %146 : vector<32x1xf32>
      %152 = arith.mulf %151, %150 : vector<32x1xf32>
      %153 = vector.shape_cast %152 : vector<32x1xf32> to vector<1x32x1xf32>
      %cst_74 = arith.constant dense<0.000000e+00> : vector<1xf32>
      %154 = vector.multi_reduction <add>, %153, %cst_74 [1, 2] : vector<1x32x1xf32> to vector<1xf32>
      %155 = vector.shape_cast %154 : vector<1xf32> to vector<1x1x1xf32>
      %156 = vector.extract %155[0, 0, 0] : f32 from vector<1x1x1xf32>
      %157 = vector.broadcast %156 : f32 to vector<1x1xf32>
      %158 = vector.shape_cast %150 : vector<32x1xf32> to vector<1x32x1xf32>
      %cst_75 = arith.constant dense<0.000000e+00> : vector<1xf32>
      %159 = vector.multi_reduction <add>, %158, %cst_75 [1, 2] : vector<1x32x1xf32> to vector<1xf32>
      %160 = vector.shape_cast %159 : vector<1xf32> to vector<1x1x1xf32>
      %161 = vector.extract %160[0, 0, 0] : f32 from vector<1x1x1xf32>
      %162 = vector.broadcast %161 : f32 to vector<1x1xf32>
      %cst_76 = arith.constant 1.000000e+00 : f32
      %163 = vector.broadcast %cst_76 : f32 to vector<1x1xf32>
      %164 = arith.maximumf %162, %163 : vector<1x1xf32>
      %165 = arith.divf %157, %164 : vector<1x1xf32>
      %c0_77 = arith.constant 0 : index
      %c0_78 = arith.constant 0 : index
      %166 = vector.load %arg17[%c0_77, %c0_78] : memref<1x1xf32, #tpu.memory_space<vmem>>, vector<1x1xf32>
      tpu.vector_store %arg17[%c0_77, %c0_78], %165 {strides = array<i32>} : memref<1x1xf32, #tpu.memory_space<vmem>>, vector<1x1xf32>,
    } else {
    }
    return
  }
  func.func @transform_0(%arg0: i32) -> (i32, i32) {
    %c0_i32 = arith.constant 0 : i32
    %c0_i32_0 = arith.constant 0 : i32
    %c0_i32_1 = arith.constant 0 : i32
    return %c0_i32, %c0_i32_0 : i32, i32
  }
  func.func @transform_1(%arg0: i32) -> (i32, i32) {
    %c0_i32 = arith.constant 0 : i32
    %c0_i32_0 = arith.constant 0 : i32
    %c0_i32_1 = arith.constant 0 : i32
    return %c0_i32, %c0_i32_0 : i32, i32
  }
  func.func @transform_2(%arg0: i32) -> (i32, i32) {
    %c0_i32 = arith.constant 0 : i32
    %c0_i32_0 = arith.constant 0 : i32
    %c0_i32_1 = arith.constant 0 : i32
    return %c0_i32, %c0_i32_0 : i32, i32
  }
  func.func @transform_3(%arg0: i32) -> (i32, i32) {
    %c0_i32 = arith.constant 0 : i32
    %c0_i32_0 = arith.constant 0 : i32
    %c0_i32_1 = arith.constant 0 : i32
    return %c0_i32, %c0_i32_0 : i32, i32
  }
  func.func @transform_4(%arg0: i32) -> (i32, i32) {
    %c0_i32 = arith.constant 0 : i32
    %c0_i32_0 = arith.constant 0 : i32
    %c0_i32_1 = arith.constant 0 : i32
    return %c0_i32, %c0_i32_0 : i32, i32
  }
  func.func @transform_5(%arg0: i32) -> (i32, i32) {
    %c0_i32 = arith.constant 0 : i32
    %c0_i32_0 = arith.constant 0 : i32
    %c0_i32_1 = arith.constant 0 : i32
    return %c0_i32, %c0_i32_0 : i32, i32
  }
  func.func @transform_6(%arg0: i32) -> (i32, i32, i32) {
    %c0_i32 = arith.constant 0 : i32
    %c0_i32_0 = arith.constant 0 : i32
    %c0_i32_1 = arith.constant 0 : i32
    return %arg0, %c0_i32, %c0_i32_0 : i32, i32, i32
  }
  func.func @transform_7(%arg0: i32) -> (i32, i32, i32) {
    %c0_i32 = arith.constant 0 : i32
    %c0_i32_0 = arith.constant 0 : i32
    %c0_i32_1 = arith.constant 0 : i32
    return %arg0, %c0_i32, %c0_i32_0 : i32, i32, i32
  }
  func.func @transform_8(%arg0: i32) -> (i32, i32, i32) {
    %c0_i32 = arith.constant 0 : i32
    %c0_i32_0 = arith.constant 0 : i32
    %c0_i32_1 = arith.constant 0 : i32
    return %arg0, %c0_i32, %c0_i32_0 : i32, i32, i32
  }
  func.func @transform_9(%arg0: i32) -> (i32, i32, i32) {
    %c0_i32 = arith.constant 0 : i32
    %c0_i32_0 = arith.constant 0 : i32
    %c0_i32_1 = arith.constant 0 : i32
    return %arg0, %c0_i32, %c0_i32_0 : i32, i32, i32
  }
  func.func @transform_10(%arg0: i32) -> (i32, i32, i32) {
    %c0_i32 = arith.constant 0 : i32
    %c0_i32_0 = arith.constant 0 : i32
    %c0_i32_1 = arith.constant 0 : i32
    return %arg0, %c0_i32, %c0_i32_0 : i32, i32, i32
  }
  func.func @transform_11(%arg0: i32) -> (i32, i32, i32) {
    %c0_i32 = arith.constant 0 : i32
    %c0_i32_0 = arith.constant 0 : i32
    %c0_i32_1 = arith.constant 0 : i32
    return %arg0, %c0_i32, %c0_i32_0 : i32, i32, i32
  }
  func.func @transform_12(%arg0: i32) -> (i32, i32, i32) {
    %c0_i32 = arith.constant 0 : i32
    %c0_i32_0 = arith.constant 0 : i32
    %c0_i32_1 = arith.constant 0 : i32
    return %arg0, %c0_i32, %c0_i32_0 : i32, i32, i32
  }
  func.func @transform_13(%arg0: i32) -> (i32, i32) {
    %c0_i32 = arith.constant 0 : i32
    %c0_i32_0 = arith.constant 0 : i32
    %c0_i32_1 = arith.constant 0 : i32
    return %c0_i32, %c0_i32_0 : i32, i32
  }
  func.func @transform_14(%arg0: i32) -> (i32, i32) {
    %c0_i32 = arith.constant 0 : i32
    %c0_i32_0 = arith.constant 0 : i32
    %c0_i32_1 = arith.constant 0 : i32
    return %c0_i32, %c0_i32_0 : i32, i32
  }
  func.func @transform_15(%arg0: i32) -> (i32, i32) {
    %c0_i32 = arith.constant 0 : i32
    %c0_i32_0 = arith.constant 0 : i32
    %c0_i32_1 = arith.constant 0 : i32
    return %c0_i32, %c0_i32_0 : i32, i32
  }
  func.func @transform_16(%arg0: i32) -> (i32, i32) {
    %c0_i32 = arith.constant 0 : i32
    %c0_i32_0 = arith.constant 0 : i32
    %c0_i32_1 = arith.constant 0 : i32
    return %c0_i32, %c0_i32_0 : i32, i32
  }
}

</mosaic_0001>

<llo_original>
// kernel: tile.24
$region0: #{tile.24}
  %s0 = inlined_call_operand.vmem [shape: f32[16,2,32], index: 0, kind: input, shape index: {}]
  %s1 = inlined_call_operand.vmem [shape: f32[16,64], index: 1, kind: output, shape index: {}]
  $region1: #{tile.24} parent=0
    #allocation0 [shape = 'u8[65536]{0}', space=vmem, size = 0x10000, scoped, tag = 'scoped mem for input reshape']
    %s3 = sshllo.u32 0, 2
    %s4 = smul.addr 2, 15
    %s5 = scalar_lea.vmem %s0, %s4
    %v6 = vld [vmem:[%s5] sm:%s3]
    %s7 = scalar_lea.vmem [#allocation0], 120
    %8 = vst [vmem:[%s7] sm:%s3] %v6
    %s9 = smul.addr 2, 14
    %s10 = scalar_lea.vmem %s0, %s9
    %v11 = vld [vmem:[%s10] sm:%s3]
    %s12 = scalar_lea.vmem [#allocation0], 112
    %13 = vst [vmem:[%s12] sm:%s3] %v11
    %s14 = smul.addr 2, 13
    %s15 = scalar_lea.vmem %s0, %s14
    %v16 = vld [vmem:[%s15] sm:%s3]
    %s17 = scalar_lea.vmem [#allocation0], 104
    %18 = vst [vmem:[%s17] sm:%s3] %v16
    %s19 = smul.addr 2, 12
    %s20 = scalar_lea.vmem %s0, %s19
    %v21 = vld [vmem:[%s20] sm:%s3]
    %s22 = scalar_lea.vmem [#allocation0], 96
    %23 = vst [vmem:[%s22] sm:%s3] %v21
    %s24 = smul.addr 2, 11
    %s25 = scalar_lea.vmem %s0, %s24
    %v26 = vld [vmem:[%s25] sm:%s3]
    %s27 = scalar_lea.vmem [#allocation0], 88
    %28 = vst [vmem:[%s27] sm:%s3] %v26
    %s29 = smul.addr 2, 10
    %s30 = scalar_lea.vmem %s0, %s29
    %v31 = vld [vmem:[%s30] sm:%s3]
    %s32 = scalar_lea.vmem [#allocation0], 80
    %33 = vst [vmem:[%s32] sm:%s3] %v31
    %s34 = smul.addr 2, 9
    %s35 = scalar_lea.vmem %s0, %s34
    %v36 = vld [vmem:[%s35] sm:%s3]
    %s37 = scalar_lea.vmem [#allocation0], 72
    %38 = vst [vmem:[%s37] sm:%s3] %v36
    %s39 = smul.addr 2, 8
    %s40 = scalar_lea.vmem %s0, %s39
    %v41 = vld [vmem:[%s40] sm:%s3]
    %s42 = scalar_lea.vmem [#allocation0], 64
    %43 = vst [vmem:[%s42] sm:%s3] %v41
    %s44 = smul.addr 2, 7
    %s45 = scalar_lea.vmem %s0, %s44
    %v46 = vld [vmem:[%s45] sm:%s3]
    %s47 = scalar_lea.vmem [#allocation0], 56
    %48 = vst [vmem:[%s47] sm:%s3] %v46
    %s49 = smul.addr 2, 6
    %s50 = scalar_lea.vmem %s0, %s49
    %v51 = vld [vmem:[%s50] sm:%s3]
    %s52 = scalar_lea.vmem [#allocation0], 48
    %53 = vst [vmem:[%s52] sm:%s3] %v51
    %s54 = smul.addr 2, 5
    %s55 = scalar_lea.vmem %s0, %s54
    %v56 = vld [vmem:[%s55] sm:%s3]
    %s57 = scalar_lea.vmem [#allocation0], 40
    %58 = vst [vmem:[%s57] sm:%s3] %v56
    %s59 = smul.addr 2, 4
    %s60 = scalar_lea.vmem %s0, %s59
    %v61 = vld [vmem:[%s60] sm:%s3]
    %s62 = scalar_lea.vmem [#allocation0], 32
    %63 = vst [vmem:[%s62] sm:%s3] %v61
    %s64 = smul.addr 2, 3
    %s65 = scalar_lea.vmem %s0, %s64
    %v66 = vld [vmem:[%s65] sm:%s3]
    %s67 = scalar_lea.vmem [#allocation0], 24
    %68 = vst [vmem:[%s67] sm:%s3] %v66
    %s69 = smul.addr 2, 2
    %s70 = scalar_lea.vmem %s0, %s69
    %v71 = vld [vmem:[%s70] sm:%s3]
    %s72 = scalar_lea.vmem [#allocation0], 16
    %73 = vst [vmem:[%s72] sm:%s3] %v71
    %s74 = scalar_lea.vmem %s0, 2
    %v75 = vld [vmem:[%s74] sm:%s3]
    %s76 = scalar_lea.vmem [#allocation0], 8
    %77 = vst [vmem:[%s76] sm:%s3] %v75
    %v78 = vld [vmem:[%s0] sm:%s3]
    %79 = vst [vmem:[#allocation0] sm:%s3] %v78
    %v80 = vld [vmem:[#allocation0] ss:$8 sm:$0xf]
    %v81 = vld [vmem:[#allocation0] ss:$8 sm:$0xf0]
    %vm82 = vcmask 1047556
    %v83 = vsel %vm82, %v81, %v80
    %vm84 = vcmask 261120
    %85 = vst.msk [vmem:[%s1] sm:$0xff] %vm84, %v83
    %s86 = scalar_lea.vmem [#allocation0], 64
    %v87 = vld [vmem:[%s86] ss:$8 sm:$0xf]
    %s88 = scalar_lea.vmem [#allocation0], 64
    %v89 = vld [vmem:[%s88] ss:$8 sm:$0xf0]
    %vm90 = vcmask 1047556
    %v91 = vsel %vm90, %v89, %v87
    %vm92 = vcmask 261120
    %s93 = scalar_lea.vmem %s1, 8
    %94 = vst.msk [vmem:[%s93] sm:$0xff] %vm92, %v91
    %s95 = scalar_lea.vmem [#allocation0], 1
    %v96 = vld [vmem:[%s95] ss:$8 sm:$0xf]
    %s97 = scalar_lea.vmem [#allocation0], 1
    %v98 = vld [vmem:[%s97] ss:$8 sm:$0xf0]
    %vm99 = vcmask 1047556
    %v100 = vsel %vm99, %v98, %v96
    %101 = vrot.lane.b32.xlu0 %v100, 32
    %v102 = vpop.permute.xlu0 %101
    %vm103 = vcmask 523520
    %104 = vst.msk [vmem:[%s1] sm:$0xff] %vm103, %v102
    %s105 = scalar_lea.vmem [#allocation0], 65
    %v106 = vld [vmem:[%s105] ss:$8 sm:$0xf]
    %s107 = scalar_lea.vmem [#allocation0], 65
    %v108 = vld [vmem:[%s107] ss:$8 sm:$0xf0]
    %vm109 = vcmask 1047556
    %v110 = vsel %vm109, %v108, %v106
    %111 = vrot.lane.b32.xlu0 %v110, 32
    %v112 = vpop.permute.xlu0 %111
    %vm113 = vcmask 523520
    %s114 = scalar_lea.vmem %s1, 8
    %115 = vst.msk [vmem:[%s114] sm:$0xff] %vm113, %v112

// kernel: qwenvl_vqa_forward.1
$region0: #{qwenvl_vqa_forward.1}
  #allocation0 [shape = 'u32[]', space=smem, size = 0x4, offset = 0x4, fixed_abs, tag = 'smem constant byte address 0x4 - core index']
  #allocation1 [shape = 'u32[144,128]{1,0:T(1,128)}', space=vmem, size = 0x12000, scoped, tag = 'internal scratch']
  #allocation2 [shape = 'f32[32,64]{1,0:T(8,128)}', space=vmem, size = 0x4000, scoped, tag = 'scratch operand']
  #allocation3 [shape = 'f32[32,64]{1,0:T(8,128)}', space=vmem, size = 0x4000, scoped, tag = 'scratch operand']
  %s0 = inlined_call_operand.vmem [shape: f32[32,64], index: 0, kind: input, shape index: {}]
  %s1 = inlined_call_operand.vmem [shape: f32[32,32], index: 1, kind: input, shape index: {}]
  %s2 = inlined_call_operand.vmem [shape: f32[32,128], index: 2, kind: input, shape index: {}]
  %s3 = inlined_call_operand.vmem [shape: f32[32,128], index: 3, kind: input, shape index: {}]
  %s4 = inlined_call_operand.vmem [shape: f32[128,128], index: 4, kind: input, shape index: {}]
  %s5 = inlined_call_operand.vmem [shape: s32[32,1], index: 5, kind: input, shape index: {}]
  %s6 = inlined_call_operand.vmem [shape: f32[2,1,64], index: 6, kind: input, shape index: {}]
  %s7 = inlined_call_operand.vmem [shape: bf16[2,64,192], index: 7, kind: input, shape index: {}]
  %s8 = inlined_call_operand.vmem [shape: f32[2,1,192], index: 8, kind: input, shape index: {}]
  %s9 = inlined_call_operand.vmem [shape: bf16[2,64,64], index: 9, kind: input, shape index: {}]
  %s10 = inlined_call_operand.vmem [shape: f32[2,1,64], index: 10, kind: input, shape index: {}]
  %s11 = inlined_call_operand.vmem [shape: bf16[2,64,256], index: 11, kind: input, shape index: {}]
  %s12 = inlined_call_operand.vmem [shape: bf16[2,128,64], index: 12, kind: input, shape index: {}]
  %s13 = inlined_call_operand.vmem [shape: f32[1,64], index: 13, kind: input, shape index: {}]
  %s14 = inlined_call_operand.vmem [shape: bf16[64,128], index: 14, kind: input, shape index: {}]
  %s15 = inlined_call_operand.hbm [shape: bf16[32,128], index: 15, kind: output, shape index: {0}]
  %s16 = inlined_call_operand.hbm [shape: f32[1,1], index: 16, kind: output, shape index: {1}]
  %17 = xla_tuple %s15, %s16
  %s18 = sld [smem:[#allocation0]]
  $region109: #{qwenvl_vqa_forward.1} parent=0
    _
  %s20 = ssub.s32 1, %s18
  %s21 = scalar_select 0, %s20, %s18
  $region1: #{qwenvl_vqa_forward.1} parent=0
    #allocation4 [shape = 'u8[8192]{0}', space=vmem, size = 0x2000, scoped, tag = 'output window, operand 0, single buffered']
    #allocation5 [shape = 's32[2]{0}', space=sflag, size = 0x8, scoped, tag = 'scoped memory for qwenvl_vqa_forward.1']
    #allocation6 [shape = 'u8[512]{0}', space=vmem, size = 0x400, scoped, tag = 'output window, operand 1, single buffered']
    #allocation7 [shape = 's32[1]{0}', space=sflag, size = 0x4, scoped, tag = 'scoped memory for qwenvl_vqa_forward.1']
    %22 = vsyncpa [#allocation5], 0
    %23 = vsyncpa [#allocation7], 0
    loop: start=0, step=1, limit=4
    $region2: #{qwenvl_vqa_forward.1} parent=1 // loop_pre_header
      _
    $region3: #{qwenvl_vqa_forward.1} parent=1 // loop_header
      %s25 = sphi 0, %s29
      %p26 = scmp.ge.s32.totalorder %s25, 4
      %s33 = sphi 0, %s33
      %s35 = sphi 0, %s33
      %s36 = sphi 0, %s35
      %s50 = sphi 0, %s36
      %s54 = sphi 0, %s54
      %s56 = sphi 0, %s54
      %s57 = sphi 0, %s56
      %s71 = sphi 0, %s57
      %s75 = sphi 0, %s75
      %s77 = sphi 0, %s75
      %s78 = sphi 0, %s77
      %s92 = sphi 0, %s78
      %s96 = sphi 0, %s96
      %s98 = sphi 0, %s96
      %s99 = sphi 0, %s98
      %s113 = sphi 0, %s99
      %s117 = sphi 0, %s117
      %s119 = sphi 0, %s117
      %s120 = sphi 0, %s119
      %s134 = sphi 0, %s120
      %s138 = sphi 0, %s138
      %s140 = sphi 0, %s138
      %s141 = sphi 0, %s140
      %s155 = sphi 0, %s141
      %s161 = sphi 0, %s163
      %s164 = sphi 0, %s161
      %s165 = sphi 0, %s164
      %s181 = sphi 0, %s165
      %s187 = sphi 0, %s189
      %s190 = sphi 0, %s187
      %s191 = sphi 0, %s190
      %s207 = sphi 0, %s191
      %s213 = sphi 0, %s215
      %s216 = sphi 0, %s213
      %s217 = sphi 0, %s216
      %s233 = sphi 0, %s217
      %s239 = sphi 0, %s241
      %s242 = sphi 0, %s239
      %s243 = sphi 0, %s242
      %s259 = sphi 0, %s243
      %s265 = sphi 0, %s267
      %s268 = sphi 0, %s265
      %s269 = sphi 0, %s268
      %s285 = sphi 0, %s269
      %s291 = sphi 0, %s293
      %s294 = sphi 0, %s291
      %s295 = sphi 0, %s294
      %s311 = sphi 0, %s295
      %s317 = sphi 0, %s319
      %s320 = sphi 0, %s317
      %s321 = sphi 0, %s320
      %s337 = sphi 0, %s321
      %s341 = sphi 0, %s341
      %s343 = sphi 0, %s341
      %s344 = sphi 0, %s343
      %s358 = sphi 0, %s344
      %s362 = sphi 0, %s362
      %s364 = sphi 0, %s362
      %s365 = sphi 0, %s364
      %s379 = sphi 0, %s365
      %s383 = sphi 0, %s383
      %s385 = sphi 0, %s383
      %s386 = sphi 0, %s385
      %s400 = sphi 0, %s386
      %s404 = sphi 0, %s404
      %s406 = sphi 0, %s404
      %s407 = sphi 0, %s406
      %s421 = sphi 0, %s407
    $region4: #{qwenvl_vqa_forward.1} parent=1 // loop_header_branch
      %28 = sbr.rel (%p26) target = $region8
    $region5: #{qwenvl_vqa_forward.1} parent=1 // loop_body
      %s30 = ssub.s32 %s25, 1
      %s31 = ssub.s32 %s25, 2
      %s32 = sadd.s32 %s25, 1
      %s34 = sadd.s32 %s33, 1
      %p37 = scmp.eq.s32.totalorder %s25, 1
      %p38 = scmp.ne.s32.totalorder %s33, %s35
      %p39 = scmp.eq.s32.totalorder %s25, 0
      %p40 = por %p38, %p39
      %p41 = scmp.ne.s32.totalorder %s33, %s35
      %p42 = scmp.eq.s32.totalorder %s30, 1
      %p43 = por %p41, %p42
      %p44 = scmp.ne.s32.totalorder %s35, %s36
      %p45 = scmp.eq.s32.totalorder %s30, 0
      %p46 = por %p44, %p45
      %p47 = scmp.ne.s32.totalorder %s35, %s36
      %p48 = scmp.eq.s32.totalorder %s31, 1
      %p49 = por %p47, %p48
      %p51 = scmp.ne.s32.totalorder %s36, %s50
      %p52 = scmp.eq.s32.totalorder %s31, 0
      %p53 = por %p51, %p52
      %s55 = sadd.s32 %s54, 1
      %p58 = scmp.eq.s32.totalorder %s25, 1
      %p59 = scmp.ne.s32.totalorder %s54, %s56
      %p60 = scmp.eq.s32.totalorder %s25, 0
      %p61 = por %p59, %p60
      %p62 = scmp.ne.s32.totalorder %s54, %s56
      %p63 = scmp.eq.s32.totalorder %s30, 1
      %p64 = por %p62, %p63
      %p65 = scmp.ne.s32.totalorder %s56, %s57
      %p66 = scmp.eq.s32.totalorder %s30, 0
      %p67 = por %p65, %p66
      %p68 = scmp.ne.s32.totalorder %s56, %s57
      %p69 = scmp.eq.s32.totalorder %s31, 1
      %p70 = por %p68, %p69
      %p72 = scmp.ne.s32.totalorder %s57, %s71
      %p73 = scmp.eq.s32.totalorder %s31, 0
      %p74 = por %p72, %p73
      %s76 = sadd.s32 %s75, 1
      %p79 = scmp.eq.s32.totalorder %s25, 1
      %p80 = scmp.ne.s32.totalorder %s75, %s77
      %p81 = scmp.eq.s32.totalorder %s25, 0
      %p82 = por %p80, %p81
      %p83 = scmp.ne.s32.totalorder %s75, %s77
      %p84 = scmp.eq.s32.totalorder %s30, 1
      %p85 = por %p83, %p84
      %p86 = scmp.ne.s32.totalorder %s77, %s78
      %p87 = scmp.eq.s32.totalorder %s30, 0
      %p88 = por %p86, %p87
      %p89 = scmp.ne.s32.totalorder %s77, %s78
      %p90 = scmp.eq.s32.totalorder %s31, 1
      %p91 = por %p89, %p90
      %p93 = scmp.ne.s32.totalorder %s78, %s92
      %p94 = scmp.eq.s32.totalorder %s31, 0
      %p95 = por %p93, %p94
      %s97 = sadd.s32 %s96, 1
      %p100 = scmp.eq.s32.totalorder %s25, 1
      %p101 = scmp.ne.s32.totalorder %s96, %s98
      %p102 = scmp.eq.s32.totalorder %s25, 0
      %p103 = por %p101, %p102
      %p104 = scmp.ne.s32.totalorder %s96, %s98
      %p105 = scmp.eq.s32.totalorder %s30, 1
      %p106 = por %p104, %p105
      %p107 = scmp.ne.s32.totalorder %s98, %s99
      %p108 = scmp.eq.s32.totalorder %s30, 0
      %p109 = por %p107, %p108
      %p110 = scmp.ne.s32.totalorder %s98, %s99
      %p111 = scmp.eq.s32.totalorder %s31, 1
      %p112 = por %p110, %p111
      %p114 = scmp.ne.s32.totalorder %s99, %s113
      %p115 = scmp.eq.s32.totalorder %s31, 0
      %p116 = por %p114, %p115
      %s118 = sadd.s32 %s117, 1
      %p121 = scmp.eq.s32.totalorder %s25, 1
      %p122 = scmp.ne.s32.totalorder %s117, %s119
      %p123 = scmp.eq.s32.totalorder %s25, 0
      %p124 = por %p122, %p123
      %p125 = scmp.ne.s32.totalorder %s117, %s119
      %p126 = scmp.eq.s32.totalorder %s30, 1
      %p127 = por %p125, %p126
      %p128 = scmp.ne.s32.totalorder %s119, %s120
      %p129 = scmp.eq.s32.totalorder %s30, 0
      %p130 = por %p128, %p129
      %p131 = scmp.ne.s32.totalorder %s119, %s120
      %p132 = scmp.eq.s32.totalorder %s31, 1
      %p133 = por %p131, %p132
      %p135 = scmp.ne.s32.totalorder %s120, %s134
      %p136 = scmp.eq.s32.totalorder %s31, 0
      %p137 = por %p135, %p136
      %s139 = sadd.s32 %s138, 1
      %p142 = scmp.eq.s32.totalorder %s25, 1
      %p143 = scmp.ne.s32.totalorder %s138, %s140
      %p144 = scmp.eq.s32.totalorder %s25, 0
      %p145 = por %p143, %p144
      %p146 = scmp.ne.s32.totalorder %s138, %s140
      %p147 = scmp.eq.s32.totalorder %s30, 1
      %p148 = por %p146, %p147
      %p149 = scmp.ne.s32.totalorder %s140, %s141
      %p150 = scmp.eq.s32.totalorder %s30, 0
      %p151 = por %p149, %p150
      %p152 = scmp.ne.s32.totalorder %s140, %s141
      %p153 = scmp.eq.s32.totalorder %s31, 1
      %p154 = por %p152, %p153
      %p156 = scmp.ne.s32.totalorder %s141, %s155
      %p157 = scmp.eq.s32.totalorder %s31, 0
      %p158 = por %p156, %p157
      %s159 = ssub.s32 %s25, %s32
      %p160 = scmp.eq.s32.totalorder %s159, 0
      %s162 = sadd.s32 %s161, 1
      %s163 = scalar_select %p160, %s161, %s162
      %p166 = pneg %p160
      %p167 = scmp.eq.s32.totalorder %s25, 1
      %p168 = por %p166, %p167
      %p169 = scmp.ne.s32.totalorder %s161, %s164
      %p170 = scmp.eq.s32.totalorder %s25, 0
      %p171 = por %p169, %p170
      %p172 = scmp.ne.s32.totalorder %s161, %s164
      %p173 = scmp.eq.s32.totalorder %s30, 1
      %p174 = por %p172, %p173
      %p175 = scmp.ne.s32.totalorder %s164, %s165
      %p176 = scmp.eq.s32.totalorder %s30, 0
      %p177 = por %p175, %p176
      %p178 = scmp.ne.s32.totalorder %s164, %s165
      %p179 = scmp.eq.s32.totalorder %s31, 1
      %p180 = por %p178, %p179
      %p182 = scmp.ne.s32.totalorder %s165, %s181
      %p183 = scmp.eq.s32.totalorder %s31, 0
      %p184 = por %p182, %p183
      %s185 = ssub.s32 %s25, %s32
      %p186 = scmp.eq.s32.totalorder %s185, 0
      %s188 = sadd.s32 %s187, 1
      %s189 = scalar_select %p186, %s187, %s188
      %p192 = pneg %p186
      %p193 = scmp.eq.s32.totalorder %s25, 1
      %p194 = por %p192, %p193
      %p195 = scmp.ne.s32.totalorder %s187, %s190
      %p196 = scmp.eq.s32.totalorder %s25, 0
      %p197 = por %p195, %p196
      %p198 = scmp.ne.s32.totalorder %s187, %s190
      %p199 = scmp.eq.s32.totalorder %s30, 1
      %p200 = por %p198, %p199
      %p201 = scmp.ne.s32.totalorder %s190, %s191
      %p202 = scmp.eq.s32.totalorder %s30, 0
      %p203 = por %p201, %p202
      %p204 = scmp.ne.s32.totalorder %s190, %s191
      %p205 = scmp.eq.s32.totalorder %s31, 1
      %p206 = por %p204, %p205
      %p208 = scmp.ne.s32.totalorder %s191, %s207
      %p209 = scmp.eq.s32.totalorder %s31, 0
      %p210 = por %p208, %p209
      %s211 = ssub.s32 %s25, %s32
      %p212 = scmp.eq.s32.totalorder %s211, 0
      %s214 = sadd.s32 %s213, 1
      %s215 = scalar_select %p212, %s213, %s214
      %p218 = pneg %p212
      %p219 = scmp.eq.s32.totalorder %s25, 1
      %p220 = por %p218, %p219
      %p221 = scmp.ne.s32.totalorder %s213, %s216
      %p222 = scmp.eq.s32.totalorder %s25, 0
      %p223 = por %p221, %p222
      %p224 = scmp.ne.s32.totalorder %s213, %s216
      %p225 = scmp.eq.s32.totalorder %s30, 1
      %p226 = por %p224, %p225
      %p227 = scmp.ne.s32.totalorder %s216, %s217
      %p228 = scmp.eq.s32.totalorder %s30, 0
      %p229 = por %p227, %p228
      %p230 = scmp.ne.s32.totalorder %s216, %s217
      %p231 = scmp.eq.s32.totalorder %s31, 1
      %p232 = por %p230, %p231
      %p234 = scmp.ne.s32.totalorder %s217, %s233
      %p235 = scmp.eq.s32.totalorder %s31, 0
      %p236 = por %p234, %p235
      %s237 = ssub.s32 %s25, %s32
      %p238 = scmp.eq.s32.totalorder %s237, 0
      %s240 = sadd.s32 %s239, 1
      %s241 = scalar_select %p238, %s239, %s240
      %p244 = pneg %p238
      %p245 = scmp.eq.s32.totalorder %s25, 1
      %p246 = por %p244, %p245
      %p247 = scmp.ne.s32.totalorder %s239, %s242
      %p248 = scmp.eq.s32.totalorder %s25, 0
      %p249 = por %p247, %p248
      %p250 = scmp.ne.s32.totalorder %s239, %s242
      %p251 = scmp.eq.s32.totalorder %s30, 1
      %p252 = por %p250, %p251
      %p253 = scmp.ne.s32.totalorder %s242, %s243
      %p254 = scmp.eq.s32.totalorder %s30, 0
      %p255 = por %p253, %p254
      %p256 = scmp.ne.s32.totalorder %s242, %s243
      %p257 = scmp.eq.s32.totalorder %s31, 1
      %p258 = por %p256, %p257
      %p260 = scmp.ne.s32.totalorder %s243, %s259
      %p261 = scmp.eq.s32.totalorder %s31, 0
      %p262 = por %p260, %p261
      %s263 = ssub.s32 %s25, %s32
      %p264 = scmp.eq.s32.totalorder %s263, 0
      %s266 = sadd.s32 %s265, 1
      %s267 = scalar_select %p264, %s265, %s266
      %p270 = pneg %p264
      %p271 = scmp.eq.s32.totalorder %s25, 1
      %p272 = por %p270, %p271
      %p273 = scmp.ne.s32.totalorder %s265, %s268
      %p274 = scmp.eq.s32.totalorder %s25, 0
      %p275 = por %p273, %p274
      %p276 = scmp.ne.s32.totalorder %s265, %s268
      %p277 = scmp.eq.s32.totalorder %s30, 1
      %p278 = por %p276, %p277
      %p279 = scmp.ne.s32.totalorder %s268, %s269
      %p280 = scmp.eq.s32.totalorder %s30, 0
      %p281 = por %p279, %p280
      %p282 = scmp.ne.s32.totalorder %s268, %s269
      %p283 = scmp.eq.s32.totalorder %s31, 1
      %p284 = por %p282, %p283
      %p286 = scmp.ne.s32.totalorder %s269, %s285
      %p287 = scmp.eq.s32.totalorder %s31, 0
      %p288 = por %p286, %p287
      %s289 = ssub.s32 %s25, %s32
      %p290 = scmp.eq.s32.totalorder %s289, 0
      %s292 = sadd.s32 %s291, 1
      %s293 = scalar_select %p290, %s291, %s292
      %p296 = pneg %p290
      %p297 = scmp.eq.s32.totalorder %s25, 1
      %p298 = por %p296, %p297
      %p299 = scmp.ne.s32.totalorder %s291, %s294
      %p300 = scmp.eq.s32.totalorder %s25, 0
      %p301 = por %p299, %p300
      %p302 = scmp.ne.s32.totalorder %s291, %s294
      %p303 = scmp.eq.s32.totalorder %s30, 1
      %p304 = por %p302, %p303
      %p305 = scmp.ne.s32.totalorder %s294, %s295
      %p306 = scmp.eq.s32.totalorder %s30, 0
      %p307 = por %p305, %p306
      %p308 = scmp.ne.s32.totalorder %s294, %s295
      %p309 = scmp.eq.s32.totalorder %s31, 1
      %p310 = por %p308, %p309
      %p312 = scmp.ne.s32.totalorder %s295, %s311
      %p313 = scmp.eq.s32.totalorder %s31, 0
      %p314 = por %p312, %p313
      %s315 = ssub.s32 %s25, %s32
      %p316 = scmp.eq.s32.totalorder %s315, 0
      %s318 = sadd.s32 %s317, 1
      %s319 = scalar_select %p316, %s317, %s318
      %p322 = pneg %p316
      %p323 = scmp.eq.s32.totalorder %s25, 1
      %p324 = por %p322, %p323
      %p325 = scmp.ne.s32.totalorder %s317, %s320
      %p326 = scmp.eq.s32.totalorder %s25, 0
      %p327 = por %p325, %p326
      %p328 = scmp.ne.s32.totalorder %s317, %s320
      %p329 = scmp.eq.s32.totalorder %s30, 1
      %p330 = por %p328, %p329
      %p331 = scmp.ne.s32.totalorder %s320, %s321
      %p332 = scmp.eq.s32.totalorder %s30, 0
      %p333 = por %p331, %p332
      %p334 = scmp.ne.s32.totalorder %s320, %s321
      %p335 = scmp.eq.s32.totalorder %s31, 1
      %p336 = por %p334, %p335
      %p338 = scmp.ne.s32.totalorder %s321, %s337
      %p339 = scmp.eq.s32.totalorder %s31, 0
      %p340 = por %p338, %p339
      %s342 = sadd.s32 %s341, 1
      %p345 = scmp.eq.s32.totalorder %s25, 1
      %p346 = scmp.ne.s32.totalorder %s341, %s343
      %p347 = scmp.eq.s32.totalorder %s25, 0
      %p348 = por %p346, %p347
      %p349 = scmp.ne.s32.totalorder %s341, %s343
      %p350 = scmp.eq.s32.totalorder %s30, 1
      %p351 = por %p349, %p350
      %p352 = scmp.ne.s32.totalorder %s343, %s344
      %p353 = scmp.eq.s32.totalorder %s30, 0
      %p354 = por %p352, %p353
      %p355 = scmp.ne.s32.totalorder %s343, %s344
      %p356 = scmp.eq.s32.totalorder %s31, 1
      %p357 = por %p355, %p356
      %p359 = scmp.ne.s32.totalorder %s344, %s358
      %p360 = scmp.eq.s32.totalorder %s31, 0
      %p361 = por %p359, %p360
      %s363 = sadd.s32 %s362, 1
      %p366 = scmp.eq.s32.totalorder %s25, 1
      %p367 = scmp.ne.s32.totalorder %s362, %s364
      %p368 = scmp.eq.s32.totalorder %s25, 0
      %p369 = por %p367, %p368
      %p370 = scmp.ne.s32.totalorder %s362, %s364
      %p371 = scmp.eq.s32.totalorder %s30, 1
      %p372 = por %p370, %p371
      %p373 = scmp.ne.s32.totalorder %s364, %s365
      %p374 = scmp.eq.s32.totalorder %s30, 0
      %p375 = por %p373, %p374
      %p376 = scmp.ne.s32.totalorder %s364, %s365
      %p377 = scmp.eq.s32.totalorder %s31, 1
      %p378 = por %p376, %p377
      %p380 = scmp.ne.s32.totalorder %s365, %s379
      %p381 = scmp.eq.s32.totalorder %s31, 0
      %p382 = por %p380, %p381
      %s384 = sadd.s32 %s383, 1
      %p387 = scmp.eq.s32.totalorder %s25, 1
      %p388 = scmp.ne.s32.totalorder %s383, %s385
      %p389 = scmp.eq.s32.totalorder %s25, 0
      %p390 = por %p388, %p389
      %p391 = scmp.ne.s32.totalorder %s383, %s385
      %p392 = scmp.eq.s32.totalorder %s30, 1
      %p393 = por %p391, %p392
      %p394 = scmp.ne.s32.totalorder %s385, %s386
      %p395 = scmp.eq.s32.totalorder %s30, 0
      %p396 = por %p394, %p395
      %p397 = scmp.ne.s32.totalorder %s385, %s386
      %p398 = scmp.eq.s32.totalorder %s31, 1
      %p399 = por %p397, %p398
      %p401 = scmp.ne.s32.totalorder %s386, %s400
      %p402 = scmp.eq.s32.totalorder %s31, 0
      %p403 = por %p401, %p402
      %s405 = sadd.s32 %s404, 1
      %p408 = scmp.eq.s32.totalorder %s25, 1
      %p409 = scmp.ne.s32.totalorder %s404, %s406
      %p410 = scmp.eq.s32.totalorder %s25, 0
      %p411 = por %p409, %p410
      %p412 = scmp.ne.s32.totalorder %s404, %s406
      %p413 = scmp.eq.s32.totalorder %s30, 1
      %p414 = por %p412, %p413
      %p415 = scmp.ne.s32.totalorder %s406, %s407
      %p416 = scmp.eq.s32.totalorder %s30, 0
      %p417 = por %p415, %p416
      %p418 = scmp.ne.s32.totalorder %s406, %s407
      %p419 = scmp.eq.s32.totalorder %s31, 1
      %p420 = por %p418, %p419
      %p422 = scmp.ne.s32.totalorder %s407, %s421
      %p423 = scmp.eq.s32.totalorder %s31, 0
      %p424 = por %p422, %p423
      %p425 = scmp.le.s32.totalorder 1, %s25
      %p426 = scmp.lt.s32.totalorder %s25, 3
      %p427 = pnand %p425, %p426
      %p428 = pneg %p427
      // Predicated region
      $region9: #{qwenvl_vqa_forward.1} parent=5 // pred_check
        _
      $region10: #{qwenvl_vqa_forward.1} parent=5 // pred_check_branch
        %430 = sbr.rel (%p427) target = $region12
      $region11: #{qwenvl_vqa_forward.1} parent=5 // pred_region
        %s431 = ssub.s32 %s25, 1
        // Predicated region
        $region13: #{qwenvl_vqa_forward.1} parent=11 // pred_check
          %p432 = pneg %p46
        $region14: #{qwenvl_vqa_forward.1} parent=11 // pred_check_branch
          %434 = sbr.rel (%p432) target = $region16
        $region15: #{qwenvl_vqa_forward.1} parent=11 // pred_region
          _
        $region16: #{qwenvl_vqa_forward.1} parent=11 // pred_fallthru
          _
        // Predicated region
        $region17: #{qwenvl_vqa_forward.1} parent=11 // pred_check
          %p435 = pneg %p67
        $region18: #{qwenvl_vqa_forward.1} parent=11 // pred_check_branch
          %437 = sbr.rel (%p435) target = $region20
        $region19: #{qwenvl_vqa_forward.1} parent=11 // pred_region
          _
        $region20: #{qwenvl_vqa_forward.1} parent=11 // pred_fallthru
          _
        // Predicated region
        $region21: #{qwenvl_vqa_forward.1} parent=11 // pred_check
          %p438 = pneg %p88
        $region22: #{qwenvl_vqa_forward.1} parent=11 // pred_check_branch
          %440 = sbr.rel (%p438) target = $region24
        $region23: #{qwenvl_vqa_forward.1} parent=11 // pred_region
          _
        $region24: #{qwenvl_vqa_forward.1} parent=11 // pred_fallthru
          _
        // Predicated region
        $region25: #{qwenvl_vqa_forward.1} parent=11 // pred_check
          %p441 = pneg %p109
        $region26: #{qwenvl_vqa_forward.1} parent=11 // pred_check_branch
          %443 = sbr.rel (%p441) target = $region28
        $region27: #{qwenvl_vqa_forward.1} parent=11 // pred_region
          _
        $region28: #{qwenvl_vqa_forward.1} parent=11 // pred_fallthru
          _
        // Predicated region
        $region29: #{qwenvl_vqa_forward.1} parent=11 // pred_check
          %p444 = pneg %p130
        $region30: #{qwenvl_vqa_forward.1} parent=11 // pred_check_branch
          %446 = sbr.rel (%p444) target = $region32
        $region31: #{qwenvl_vqa_forward.1} parent=11 // pred_region
          _
        $region32: #{qwenvl_vqa_forward.1} parent=11 // pred_fallthru
          _
        // Predicated region
        $region33: #{qwenvl_vqa_forward.1} parent=11 // pred_check
          %p447 = pneg %p151
        $region34: #{qwenvl_vqa_forward.1} parent=11 // pred_check_branch
          %449 = sbr.rel (%p447) target = $region36
        $region35: #{qwenvl_vqa_forward.1} parent=11 // pred_region
          _
        $region36: #{qwenvl_vqa_forward.1} parent=11 // pred_fallthru
          _
        // Predicated region
        $region37: #{qwenvl_vqa_forward.1} parent=11 // pred_check
          %p450 = pneg %p354
        $region38: #{qwenvl_vqa_forward.1} parent=11 // pred_check_branch
          %452 = sbr.rel (%p450) target = $region40
        $region39: #{qwenvl_vqa_forward.1} parent=11 // pred_region
          _
        $region40: #{qwenvl_vqa_forward.1} parent=11 // pred_fallthru
          _
        // Predicated region
        $region41: #{qwenvl_vqa_forward.1} parent=11 // pred_check
          %p453 = pneg %p375
        $region42: #{qwenvl_vqa_forward.1} parent=11 // pred_check_branch
          %455 = sbr.rel (%p453) target = $region44
        $region43: #{qwenvl_vqa_forward.1} parent=11 // pred_region
          _
        $region44: #{qwenvl_vqa_forward.1} parent=11 // pred_fallthru
          _
      $region12: #{qwenvl_vqa_forward.1} parent=5 // pred_fallthru
        _
      %p456 = scmp.lt.s32.totalorder %s25, 2
      // Predicated region
      $region45: #{qwenvl_vqa_forward.1} parent=5 // pred_check
        %p457 = pneg %p456
      $region46: #{qwenvl_vqa_forward.1} parent=5 // pred_check_branch
        %459 = sbr.rel (%p457) target = $region48
      $region47: #{qwenvl_vqa_forward.1} parent=5 // pred_region
        // Predicated region
        $region49: #{qwenvl_vqa_forward.1} parent=47 // pred_check
          %p460 = pneg %p171
        $region50: #{qwenvl_vqa_forward.1} parent=47 // pred_check_branch
          %462 = sbr.rel (%p460) target = $region52
        $region51: #{qwenvl_vqa_forward.1} parent=47 // pred_region
          %p463 = scmp.lt.s32.totalorder %s25, 1
          %s464 = scalar_select %p463, %s25, 1
          %s465 = scalar_lea.vmem %s6, %s464
        $region52: #{qwenvl_vqa_forward.1} parent=47 // pred_fallthru
          _
        // Predicated region
        $region53: #{qwenvl_vqa_forward.1} parent=47 // pred_check
          %p466 = pneg %p197
        $region54: #{qwenvl_vqa_forward.1} parent=47 // pred_check_branch
          %468 = sbr.rel (%p466) target = $region56
        $region55: #{qwenvl_vqa_forward.1} parent=47 // pred_region
          %p469 = scmp.lt.s32.totalorder %s25, 1
          %s470 = scalar_select %p469, %s25, 1
          %s471 = smul.addr %s470, 16
          %s472 = smul.addr %s471, 4
          %s473 = scalar_lea.vmem %s7, %s472
        $region56: #{qwenvl_vqa_forward.1} parent=47 // pred_fallthru
          _
        // Predicated region
        $region57: #{qwenvl_vqa_forward.1} parent=47 // pred_check
          %p474 = pneg %p223
        $region58: #{qwenvl_vqa_forward.1} parent=47 // pred_check_branch
          %476 = sbr.rel (%p474) target = $region60
        $region59: #{qwenvl_vqa_forward.1} parent=47 // pred_region
          %p477 = scmp.lt.s32.totalorder %s25, 1
          %s478 = scalar_select %p477, %s25, 1
          %s479 = smul.addr %s478, 2
          %s480 = scalar_lea.vmem %s8, %s479
        $region60: #{qwenvl_vqa_forward.1} parent=47 // pred_fallthru
          _
        // Predicated region
        $region61: #{qwenvl_vqa_forward.1} parent=47 // pred_check
          %p481 = pneg %p249
        $region62: #{qwenvl_vqa_forward.1} parent=47 // pred_check_branch
          %483 = sbr.rel (%p481) target = $region64
        $region63: #{qwenvl_vqa_forward.1} parent=47 // pred_region
          %p484 = scmp.lt.s32.totalorder %s25, 1
          %s485 = scalar_select %p484, %s25, 1
          %s486 = smul.addr %s485, 8
          %s487 = smul.addr %s486, 4
          %s488 = scalar_lea.vmem %s9, %s487
        $region64: #{qwenvl_vqa_forward.1} parent=47 // pred_fallthru
          _
        // Predicated region
        $region65: #{qwenvl_vqa_forward.1} parent=47 // pred_check
          %p489 = pneg %p275
        $region66: #{qwenvl_vqa_forward.1} parent=47 // pred_check_branch
          %491 = sbr.rel (%p489) target = $region68
        $region67: #{qwenvl_vqa_forward.1} parent=47 // pred_region
          %p492 = scmp.lt.s32.totalorder %s25, 1
          %s493 = scalar_select %p492, %s25, 1
          %s494 = scalar_lea.vmem %s10, %s493
        $region68: #{qwenvl_vqa_forward.1} parent=47 // pred_fallthru
          _
        // Predicated region
        $region69: #{qwenvl_vqa_forward.1} parent=47 // pred_check
          %p495 = pneg %p301
        $region70: #{qwenvl_vqa_forward.1} parent=47 // pred_check_branch
          %497 = sbr.rel (%p495) target = $region72
        $region71: #{qwenvl_vqa_forward.1} parent=47 // pred_region
          %p498 = scmp.lt.s32.totalorder %s25, 1
          %s499 = scalar_select %p498, %s25, 1
          %s500 = smul.addr %s499, 16
          %s501 = smul.addr %s500, 4
          %s502 = scalar_lea.vmem %s11, %s501
        $region72: #{qwenvl_vqa_forward.1} parent=47 // pred_fallthru
          _
        // Predicated region
        $region73: #{qwenvl_vqa_forward.1} parent=47 // pred_check
          %p503 = pneg %p327
        $region74: #{qwenvl_vqa_forward.1} parent=47 // pred_check_branch
          %505 = sbr.rel (%p503) target = $region76
        $region75: #{qwenvl_vqa_forward.1} parent=47 // pred_region
          %p506 = scmp.lt.s32.totalorder %s25, 1
          %s507 = scalar_select %p506, %s25, 1
          %s508 = smul.addr %s507, 16
          %s509 = smul.addr %s508, 4
          %s510 = scalar_lea.vmem %s12, %s509
        $region76: #{qwenvl_vqa_forward.1} parent=47 // pred_fallthru
          _
      $region48: #{qwenvl_vqa_forward.1} parent=5 // pred_fallthru
        _
      %p511 = scmp.le.s32.totalorder 1, %s25
      %p512 = scmp.lt.s32.totalorder %s25, 3
      %p513 = pnand %p511, %p512
      %p514 = pneg %p513
      // Predicated region
      $region77: #{qwenvl_vqa_forward.1} parent=5 // pred_check
        _
      $region78: #{qwenvl_vqa_forward.1} parent=5 // pred_check_branch
        %516 = sbr.rel (%p513) target = $region80
      $region79: #{qwenvl_vqa_forward.1} parent=5 // pred_region
        %s517 = ssub.s32 %s25, 1
        %p518 = pneg %p46
        %p519 = pneg %p43
        %p520 = pneg %p67
        %p521 = pneg %p64
        %p522 = pneg %p88
        %p523 = pneg %p85
        %p524 = pneg %p109
        %p525 = pneg %p106
        %p526 = pneg %p130
        %p527 = pneg %p127
        %p528 = pneg %p151
        %p529 = pneg %p148
        %p530 = scmp.lt.s32.totalorder %s30, 1
        %s531 = scalar_select %p530, %s30, 1
        %s532 = scalar_lea.vmem %s6, %s531
        %p533 = pneg %p177
        %p534 = pneg %p174
        %p535 = scmp.lt.s32.totalorder %s30, 1
        %s536 = scalar_select %p535, %s30, 1
        %s537 = smul.addr %s536, 16
        %s538 = smul.addr %s537, 4
        %s539 = scalar_lea.vmem %s7, %s538
        %p540 = pneg %p203
        %p541 = pneg %p200
        %p542 = scmp.lt.s32.totalorder %s30, 1
        %s543 = scalar_select %p542, %s30, 1
        %s544 = smul.addr %s543, 2
        %s545 = scalar_lea.vmem %s8, %s544
        %p546 = pneg %p229
        %p547 = pneg %p226
        %p548 = scmp.lt.s32.totalorder %s30, 1
        %s549 = scalar_select %p548, %s30, 1
        %s550 = smul.addr %s549, 8
        %s551 = smul.addr %s550, 4
        %s552 = scalar_lea.vmem %s9, %s551
        %p553 = pneg %p255
        %p554 = pneg %p252
        %p555 = scmp.lt.s32.totalorder %s30, 1
        %s556 = scalar_select %p555, %s30, 1
        %s557 = scalar_lea.vmem %s10, %s556
        %p558 = pneg %p281
        %p559 = pneg %p278
        %p560 = scmp.lt.s32.totalorder %s30, 1
        %s561 = scalar_select %p560, %s30, 1
        %s562 = smul.addr %s561, 16
        %s563 = smul.addr %s562, 4
        %s564 = scalar_lea.vmem %s11, %s563
        %p565 = pneg %p307
        %p566 = pneg %p304
        %p567 = scmp.lt.s32.totalorder %s30, 1
        %s568 = scalar_select %p567, %s30, 1
        %s569 = smul.addr %s568, 16
        %s570 = smul.addr %s569, 4
        %s571 = scalar_lea.vmem %s12, %s570
        %p572 = pneg %p333
        %p573 = pneg %p330
        %p574 = pneg %p354
        %p575 = pneg %p351
        %p576 = pneg %p375
        %p577 = pneg %p372
        %p578 = pneg %p396
        %p579 = pneg %p393
        %p580 = pneg %p417
        %p581 = pneg %p414
        %p582 = scmp.lt.s32.totalorder %s30, 1
        %s583 = scalar_select %p582, %s30, 1
        %s584 = scalar_lea.vmem %s6, %s583
        %p585 = scmp.lt.s32.totalorder %s30, 1
        %s586 = scalar_select %p585, %s30, 1
        %s587 = smul.addr %s586, 16
        %s588 = smul.addr %s587, 4
        %s589 = scalar_lea.vmem %s7, %s588
        %p590 = scmp.lt.s32.totalorder %s30, 1
        %s591 = scalar_select %p590, %s30, 1
        %s592 = smul.addr %s591, 2
        %s593 = scalar_lea.vmem %s8, %s592
        %p594 = scmp.lt.s32.totalorder %s30, 1
        %s595 = scalar_select %p594, %s30, 1
        %s596 = smul.addr %s595, 8
        %s597 = smul.addr %s596, 4
        %s598 = scalar_lea.vmem %s9, %s597
        %p599 = scmp.lt.s32.totalorder %s30, 1
        %s600 = scalar_select %p599, %s30, 1
        %s601 = scalar_lea.vmem %s10, %s600
        %p602 = scmp.lt.s32.totalorder %s30, 1
        %s603 = scalar_select %p602, %s30, 1
        %s604 = smul.addr %s603, 16
        %s605 = smul.addr %s604, 4
        %s606 = scalar_lea.vmem %s11, %s605
        %p607 = scmp.lt.s32.totalorder %s30, 1
        %s608 = scalar_select %p607, %s30, 1
        %s609 = smul.addr %s608, 16
        %s610 = smul.addr %s609, 4
        %s611 = scalar_lea.vmem %s12, %s610
        %p613 = scmp.eq.s32.totalorder %s30, 0
        // Predicated region
        $region81: #{qwenvl_vqa_forward.1} parent=79 // pred_check
          %p614 = pneg %p613
        $region82: #{qwenvl_vqa_forward.1} parent=79 // pred_check_branch
          %616 = sbr.rel (%p614) target = $region84
        $region83: #{qwenvl_vqa_forward.1} parent=79 // pred_region
          %v617 = vld [vmem:[%s0] sm:$0xff]
          %v618 = vld [vmem:[%s0 + $0x8] sm:$0xff]
          %v619 = vld [vmem:[%s0 + $0x10] sm:$0xff]
          %v620 = vld [vmem:[%s0 + $0x18] sm:$0xff]
          %vm621 = vcmask 523264
          %622 = vst.msk [vmem:[#allocation2] sm:$0xff] %vm621, %v617
          %623 = vst.msk [vmem:[#allocation2 + $0x8] sm:$0xff] %vm621, %v618
          %624 = vst.msk [vmem:[#allocation2 + $0x10] sm:$0xff] %vm621, %v619
          %625 = vst.msk [vmem:[#allocation2 + $0x18] sm:$0xff] %vm621, %v620
        $region84: #{qwenvl_vqa_forward.1} parent=79 // pred_fallthru
          _
        %v626 = vld [vmem:[#allocation2] sm:$0xff]
        %v627 = vld [vmem:[#allocation2 + $0x8] sm:$0xff]
        %v628 = vld [vmem:[#allocation2 + $0x10] sm:$0xff]
        %v629 = vld [vmem:[#allocation2 + $0x18] sm:$0xff]
        %v630 = vmul.f32 %v626, %v626
        %v631 = vmul.f32 %v627, %v627
        %v632 = vmul.f32 %v628, %v628
        %v633 = vmul.f32 %v629, %v629
        %vm634 = vcmask 523264
        %v635 = vsel %vm634, %v630, 0.0
        %636 = vadd.xlane.f32.xlu0 %v635
        %v637 = vpop.xlane.xlu0 %636
        %v638 = vsel %vm634, %v631, 0.0
        %639 = vadd.xlane.f32.xlu0 %v638
        %v640 = vpop.xlane.xlu0 %639
        %v641 = vsel %vm634, %v632, 0.0
        %642 = vadd.xlane.f32.xlu0 %v641
        %v643 = vpop.xlane.xlu0 %642
        %v644 = vsel %vm634, %v633, 0.0
        %645 = vadd.xlane.f32.xlu0 %v644
        %v646 = vpop.xlane.xlu0 %645
        %v647 = vrcp.pop 64.0
        %v648 = vmul.f32 %v637, %v647
        %v649 = vmul.f32 %v640, %v647
        %v650 = vmul.f32 %v643, %v647
        %v651 = vmul.f32 %v646, %v647
        %v652 = vadd.f32 %v648, 1e-06
        %v653 = vadd.f32 %v649, 1e-06
        %v654 = vadd.f32 %v650, 1e-06
        %v655 = vadd.f32 %v651, 1e-06
        %v656 = vrsqrt.pop %v652
        %v657 = vrsqrt.pop %v653
        %v658 = vrsqrt.pop %v654
        %v659 = vrsqrt.pop %v655
        %v660 = vmul.f32 %v626, %v656
        %v661 = vmul.f32 %v627, %v657
        %v662 = vmul.f32 %v628, %v658
        %v663 = vmul.f32 %v629, %v659
        %v664 = vld [vmem:[%s584] sm:$0x1]
        %v666 = vlaneseq
        %v667 = vshrl.u32 %v666, 7
        %v668 = vsub.s32 0, %v667
        %v669 = vrot.slane %v664, %v668
        %v671 = vmul.f32 %v660, %v669
        %v672 = vmul.f32 %v661, %v669
        %v673 = vmul.f32 %v662, %v669
        %v674 = vmul.f32 %v663, %v669
        %v675 = vpack.c.bf16 %v672, %v671
        %v676 = vpack.c.bf16 %v674, %v673
        %v677 = vld [vmem:[%s589] sm:$0xff]
        %v678 = vld [vmem:[%s589 + $0x8] sm:$0xff]
        %v679 = vld [vmem:[%s589 + $0x10] sm:$0xff]
        %v680 = vld [vmem:[%s589 + $0x18] sm:$0xff]
        %v681 = vld [vmem:[%s589 + $0x20] sm:$0xff]
        %v682 = vld [vmem:[%s589 + $0x28] sm:$0xff]
        %v683 = vld [vmem:[%s589 + $0x30] sm:$0xff]
        %v684 = vld [vmem:[%s589 + $0x38] sm:$0xff]
        %v685 = vld [vmem:[%s593] sm:$0x3]
        %v687 = vlaneseq
        %v688 = vshrl.u32 %v687, 7
        %v689 = vsub.s32 0, %v688
        %v690 = vrot.slane %v685, %v689
        %v691 = vlaneseq
        %v692 = vshrl.u32 %v691, 7
        %v693 = vsub.s32 1, %v692
        %v694 = vrot.slane %v685, %v693
        %v705 = vunpack.c.l.b16 %v677
        %v706 = vunpack.c.h.b16 %v677
        %v707 = vunpack.c.l.b16 %v678
        %v708 = vunpack.c.h.b16 %v678
        %v709 = vunpack.c.l.b16 %v679
        %v710 = vunpack.c.h.b16 %v679
        %v711 = vunpack.c.l.b16 %v680
        %v712 = vunpack.c.h.b16 %v680
        %v713 = vunpack.c.l.b16 %v681
        %v714 = vunpack.c.h.b16 %v681
        %v715 = vunpack.c.l.b16 %v682
        %v716 = vunpack.c.h.b16 %v682
        %v717 = vunpack.c.l.b16 %v683
        %v718 = vunpack.c.h.b16 %v683
        %v719 = vunpack.c.l.b16 %v684
        %v720 = vunpack.c.h.b16 %v684
        %v721 = vpack.c.b16 %v707, %v705
        %v722 = vpack.c.b16 %v708, %v706
        %v723 = vpack.c.b16 %v711, %v709
        %v724 = vpack.c.b16 %v712, %v710
        %v725 = vpack.c.b16 %v715, %v713
        %v726 = vpack.c.b16 %v716, %v714
        %v727 = vpack.c.b16 %v719, %v717
        %v728 = vpack.c.b16 %v720, %v718
        %v738 = vsel %vm634, %v675, 0
        %v741 = vsel %vm634, %v676, 0
        %743 = vmatprep.subr.bf16.mxu0 %v722
        %744 = vmatpush1.bf16.msra.mxu0 %v721
        %745 = vmatprep.subr.bf16.mxu0 %v724
        %746 = vmatpush1.bf16.msra.mxu0 %v723
        %747 = vmatprep.subr.bf16.mxu0 %v726
        %748 = vmatpush1.bf16.msra.mxu0 %v725
        %749 = vmatprep.subr.bf16.mxu0 %v728
        %750 = vmatpush1.bf16.msra.mxu0 %v727
        %751 = vmatprep.subr.bf16.mxu0 0
        %752 = vmatpush1.bf16.msra.mxu0 0
        %753 = vmatprep.subr.bf16.mxu0 0
        %754 = vmatpush1.bf16.msra.mxu0 0
        %755 = vmatprep.subr.bf16.mxu0 0
        %756 = vmatpush1.bf16.msra.mxu0 0
        %757 = vmatprep.subr.bf16.mxu0 0
        %758 = vmatpush1.bf16.msra.mxu0 0
        %759 = vmatprep.subr.bf16.mxu0 0
        %760 = vmatpush1.bf16.msra.mxu0 0
        %761 = vmatprep.subr.bf16.mxu0 0
        %762 = vmatpush1.bf16.msra.mxu0 0
        %763 = vmatprep.subr.bf16.mxu0 0
        %764 = vmatpush1.bf16.msra.mxu0 0
        %765 = vmatprep.subr.bf16.mxu0 0
        %766 = vmatpush1.bf16.msra.mxu0 0
        %767 = vmatprep.subr.bf16.mxu0 0
        %768 = vmatpush1.bf16.msra.mxu0 0
        %769 = vmatprep.subr.bf16.mxu0 0
        %770 = vmatpush1.bf16.msra.mxu0 0
        %771 = vmatprep.subr.bf16.mxu0 0
        %772 = vmatpush1.bf16.msra.mxu0 0
        %773 = vmatprep.subr.bf16.mxu0 0
        %774 = vmatpush1.bf16.msra.mxu0 0
        %775 = vmatprep.mubr.bf16.mxu0 0
        %776 = vmatmul.mubr.bf16.gmra.mrb[0].mxu0 %v738
        %v777 = vpop.f32.mrb[0].mxu0
        %v778 = vadd.f32 %v690, %v777
        %v779 = vpop.f32.mrb[0].mxu0
        %v780 = vadd.f32 %v694, %v779
        %v781 = vpop.f32.mrb[0].mxu0
        %v782 = vadd.f32 %v690, %v781
        %v783 = vpop.f32.mrb[0].mxu0
        %v784 = vadd.f32 %v694, %v783
        %785 = vmatprep.mubr.bf16.mxu0 0
        %786 = vmatmul.mubr.bf16.gmra.mrb[0].mxu0 %v741
        %v787 = vpop.f32.mrb[0].mxu0
        %v788 = vadd.f32 %v690, %v787
        %v789 = vpop.f32.mrb[0].mxu0
        %v790 = vadd.f32 %v694, %v789
        %v791 = vpop.f32.mrb[0].mxu0
        %v792 = vadd.f32 %v690, %v791
        %v793 = vpop.f32.mrb[0].mxu0
        %v794 = vadd.f32 %v694, %v793
        %795 = vdwg.mxu0
        %v796 = vld [vmem:[%s2] sm:$0xff]
        %v797 = vld [vmem:[%s2 + $0x8] sm:$0xff]
        %v798 = vld [vmem:[%s2 + $0x10] sm:$0xff]
        %v799 = vld [vmem:[%s2 + $0x18] sm:$0xff]
        %v800 = vmul.f32 %v778, %v796
        %v801 = vmul.f32 %v782, %v797
        %v802 = vmul.f32 %v788, %v798
        %v803 = vmul.f32 %v792, %v799
        %v804 = vld [vmem:[%s4] sm:$0xff]
        %v805 = vld [vmem:[%s4 + $0x8] sm:$0xff]
        %v806 = vld [vmem:[%s4 + $0x10] sm:$0xff]
        %v807 = vld [vmem:[%s4 + $0x18] sm:$0xff]
        %v808 = vld [vmem:[%s4 + $0x20] sm:$0xff]
        %v809 = vld [vmem:[%s4 + $0x28] sm:$0xff]
        %v810 = vld [vmem:[%s4 + $0x30] sm:$0xff]
        %v811 = vld [vmem:[%s4 + $0x38] sm:$0xff]
        %v812 = vld [vmem:[%s4 + $0x40] sm:$0xff]
        %v813 = vld [vmem:[%s4 + $0x48] sm:$0xff]
        %v814 = vld [vmem:[%s4 + $0x50] sm:$0xff]
        %v815 = vld [vmem:[%s4 + $0x58] sm:$0xff]
        %v816 = vld [vmem:[%s4 + $0x60] sm:$0xff]
        %v817 = vld [vmem:[%s4 + $0x68] sm:$0xff]
        %v818 = vld [vmem:[%s4 + $0x70] sm:$0xff]
        %v819 = vld [vmem:[%s4 + $0x78] sm:$0xff]
        %820 = vmatprep.subr.mxu0 0.0
        %821 = vmatpush1.msra.mxu0 %v804
        %822 = vmatprep.subr.mxu0 0.0
        %823 = vmatpush1.msra.mxu0 %v805
        %824 = vmatprep.subr.mxu0 0.0
        %825 = vmatpush1.msra.mxu0 %v806
        %826 = vmatprep.subr.mxu0 0.0
        %827 = vmatpush1.msra.mxu0 %v807
        %828 = vmatprep.subr.mxu0 0.0
        %829 = vmatpush1.msra.mxu0 %v808
        %830 = vmatprep.subr.mxu0 0.0
        %831 = vmatpush1.msra.mxu0 %v809
        %832 = vmatprep.subr.mxu0 0.0
        %833 = vmatpush1.msra.mxu0 %v810
        %834 = vmatprep.subr.mxu0 0.0
        %835 = vmatpush1.msra.mxu0 %v811
        %836 = vmatprep.subr.mxu0 0.0
        %837 = vmatpush1.msra.mxu0 %v812
        %838 = vmatprep.subr.mxu0 0.0
        %839 = vmatpush1.msra.mxu0 %v813
        %840 = vmatprep.subr.mxu0 0.0
        %841 = vmatpush1.msra.mxu0 %v814
        %842 = vmatprep.subr.mxu0 0.0
        %843 = vmatpush1.msra.mxu0 %v815
        %844 = vmatprep.subr.mxu0 0.0
        %845 = vmatpush1.msra.mxu0 %v816
        %846 = vmatprep.subr.mxu0 0.0
        %847 = vmatpush1.msra.mxu0 %v817
        %848 = vmatprep.subr.mxu0 0.0
        %849 = vmatpush1.msra.mxu0 %v818
        %850 = vmatprep.subr.mxu0 0.0
        %851 = vmatpush1.msra.mxu0 %v819
        %852 = vmatprep.subr.mxu0 0.0
        %853 = vmatpush1.msra.mxu0 0.0
        %854 = vmatprep.subr.mxu0 0.0
        %855 = vmatpush1.msra.mxu0 0.0
        %856 = vmatprep.subr.mxu0 0.0
        %857 = vmatpush1.msra.mxu0 0.0
        %858 = vmatprep.subr.mxu0 0.0
        %859 = vmatpush1.msra.mxu0 0.0
        %860 = vmatprep.subr.mxu0 0.0
        %861 = vmatpush1.msra.mxu0 0.0
        %862 = vmatprep.subr.mxu0 0.0
        %863 = vmatpush1.msra.mxu0 0.0
        %864 = vmatprep.subr.mxu0 0.0
        %865 = vmatpush1.msra.mxu0 0.0
        %866 = vmatprep.subr.mxu0 0.0
        %867 = vmatpush1.msra.mxu0 0.0
        %868 = vmatprep.subr.mxu0 0.0
        %869 = vmatpush1.msra.mxu0 0.0
        %870 = vmatprep.subr.mxu0 0.0
        %871 = vmatpush1.msra.mxu0 0.0
        %872 = vmatprep.subr.mxu0 0.0
        %873 = vmatpush1.msra.mxu0 0.0
        %874 = vmatprep.subr.mxu0 0.0
        %875 = vmatpush1.msra.mxu0 0.0
        %876 = vmatprep.subr.mxu0 0.0
        %877 = vmatpush1.msra.mxu0 0.0
        %878 = vmatprep.subr.mxu0 0.0
        %879 = vmatpush1.msra.mxu0 0.0
        %880 = vmatprep.subr.mxu0 0.0
        %881 = vmatpush1.msra.mxu0 0.0
        %882 = vmatprep.subr.mxu0 0.0
        %883 = vmatpush1.msra.mxu0 0.0
        %884 = vmatprep.mubr.f32.mxu0 0.0
        %885 = vmatmul.mubr.f32.gmra.mrb[0].mxu0 %v778
        %v886 = vpop.f32.mrb[0].mxu0
        %v887 = vadd.f32 0.0, %v886
        %v888 = vpop.f32.mrb[0].mxu0
        %889 = vmatprep.mubr.f32.mxu0 0.0
        %890 = vmatmul.mubr.f32.gmra.mrb[0].mxu0 %v782
        %v891 = vpop.f32.mrb[0].mxu0
        %v892 = vadd.f32 0.0, %v891
        %v893 = vpop.f32.mrb[0].mxu0
        %894 = vmatprep.mubr.f32.mxu0 0.0
        %895 = vmatmul.mubr.f32.gmra.mrb[0].mxu0 %v788
        %v896 = vpop.f32.mrb[0].mxu0
        %v897 = vadd.f32 0.0, %v896
        %v898 = vpop.f32.mrb[0].mxu0
        %899 = vmatprep.mubr.f32.mxu0 0.0
        %900 = vmatmul.mubr.f32.gmra.mrb[0].mxu0 %v792
        %v901 = vpop.f32.mrb[0].mxu0
        %v902 = vadd.f32 0.0, %v901
        %v903 = vpop.f32.mrb[0].mxu0
        %904 = vdwg.mxu0
        %v905 = vld [vmem:[%s3] sm:$0xff]
        %v906 = vld [vmem:[%s3 + $0x8] sm:$0xff]
        %v907 = vld [vmem:[%s3 + $0x10] sm:$0xff]
        %v908 = vld [vmem:[%s3 + $0x18] sm:$0xff]
        %v909 = vmul.f32 %v887, %v905
        %v910 = vmul.f32 %v892, %v906
        %v911 = vmul.f32 %v897, %v907
        %v912 = vmul.f32 %v902, %v908
        %v913 = vadd.f32 %v800, %v909
        %v914 = vadd.f32 %v801, %v910
        %v915 = vadd.f32 %v802, %v911
        %v916 = vadd.f32 %v803, %v912
        %v917 = vld [vmem:[%s1] sm:$0xff]
        %v918 = vld [vmem:[%s1 + $0x8] sm:$0xff]
        %v919 = vld [vmem:[%s1 + $0x10] sm:$0xff]
        %v920 = vld [vmem:[%s1 + $0x18] sm:$0xff]
        %925 = vrot.lane.b32.xlu0 %v913, 64
        %v926 = vpop.permute.xlu0 %925
        %927 = vrot.lane.b32.xlu0 %v914, 64
        %v928 = vpop.permute.xlu0 %927
        %929 = vrot.lane.b32.xlu0 %v915, 64
        %v930 = vpop.permute.xlu0 %929
        %931 = vrot.lane.b32.xlu0 %v916, 64
        %v932 = vpop.permute.xlu0 %931
        %vm933 = vcmask 261120
        %v934 = vsel %vm933, %v913, 0
        %v936 = vsel %vm933, %v914, 0
        %v938 = vsel %vm933, %v915, 0
        %v940 = vsel %vm933, %v916, 0
        %v942 = vsel %vm933, %v926, 0
        %v944 = vsel %vm933, %v928, 0
        %v946 = vsel %vm933, %v930, 0
        %v948 = vsel %vm933, %v932, 0
        %950 = vmatprep.subr.mxu0 0.0
        %951 = vmatpush1.xpose.msra.mxu0 %v942
        %952 = vmatprep.subr.mxu0 0.0
        %953 = vmatpush1.xpose.msra.mxu0 %v944
        %954 = vmatprep.subr.mxu0 0.0
        %955 = vmatpush1.xpose.msra.mxu0 %v946
        %956 = vmatprep.subr.mxu0 0.0
        %957 = vmatpush1.xpose.msra.mxu0 %v948
        %958 = vmatprep.subr.mxu0 0.0
        %959 = vmatpush1.xpose.msra.mxu0 0.0
        %960 = vmatprep.subr.mxu0 0.0
        %961 = vmatpush1.xpose.msra.mxu0 0.0
        %962 = vmatprep.subr.mxu0 0.0
        %963 = vmatpush1.xpose.msra.mxu0 0.0
        %964 = vmatprep.subr.mxu0 0.0
        %965 = vmatpush1.xpose.msra.mxu0 0.0
        %966 = vmatprep.subr.mxu0 0.0
        %967 = vmatpush1.xpose.msra.mxu0 0.0
        %968 = vmatprep.subr.mxu0 0.0
        %969 = vmatpush1.xpose.msra.mxu0 0.0
        %970 = vmatprep.subr.mxu0 0.0
        %971 = vmatpush1.xpose.msra.mxu0 0.0
        %972 = vmatprep.subr.mxu0 0.0
        %973 = vmatpush1.xpose.msra.mxu0 0.0
        %974 = vmatprep.subr.mxu0 0.0
        %975 = vmatpush1.xpose.msra.mxu0 0.0
        %976 = vmatprep.subr.mxu0 0.0
        %977 = vmatpush1.xpose.msra.mxu0 0.0
        %978 = vmatprep.subr.mxu0 0.0
        %979 = vmatpush1.xpose.msra.mxu0 0.0
        %980 = vmatprep.subr.mxu0 0.0
        %981 = vmatpush1.xpose.msra.mxu0 0.0
        %982 = vmatprep.subr.mxu0 0.0
        %983 = vmatpush1.xpose.msra.mxu0 0.0
        %984 = vmatprep.subr.mxu0 0.0
        %985 = vmatpush1.xpose.msra.mxu0 0.0
        %986 = vmatprep.subr.mxu0 0.0
        %987 = vmatpush1.xpose.msra.mxu0 0.0
        %988 = vmatprep.subr.mxu0 0.0
        %989 = vmatpush1.xpose.msra.mxu0 0.0
        %990 = vmatprep.subr.mxu0 0.0
        %991 = vmatpush1.xpose.msra.mxu0 0.0
        %992 = vmatprep.subr.mxu0 0.0
        %993 = vmatpush1.xpose.msra.mxu0 0.0
        %994 = vmatprep.subr.mxu0 0.0
        %995 = vmatpush1.xpose.msra.mxu0 0.0
        %996 = vmatprep.subr.mxu0 0.0
        %997 = vmatpush1.xpose.msra.mxu0 0.0
        %998 = vmatprep.subr.mxu0 0.0
        %999 = vmatpush1.xpose.msra.mxu0 0.0
        %1000 = vmatprep.subr.mxu0 0.0
        %1001 = vmatpush1.xpose.msra.mxu0 0.0
        %1002 = vmatprep.subr.mxu0 0.0
        %1003 = vmatpush1.xpose.msra.mxu0 0.0
        %1004 = vmatprep.subr.mxu0 0.0
        %1005 = vmatpush1.xpose.msra.mxu0 0.0
        %1006 = vmatprep.subr.mxu0 0.0
        %1007 = vmatpush1.xpose.msra.mxu0 0.0
        %1008 = vmatprep.subr.mxu0 0.0
        %1009 = vmatpush1.xpose.msra.mxu0 0.0
        %1010 = vmatprep.subr.mxu0 0.0
        %1011 = vmatpush1.xpose.msra.mxu0 0.0
        %1012 = vmatprep.subr.mxu0 0.0
        %1013 = vmatpush1.xpose.msra.mxu0 0.0
        %1014 = vmatprep.mubr.f32.mxu0 0.0
        %1015 = vmatmul.mubr.f32.gmra.mrb[0].mxu0 %v934
        %v1016 = vpop.f32.mrb[0].mxu0
        %v1017 = vadd.f32 %v917, %v1016
        %v1018 = vpop.f32.mrb[0].mxu0
        %1019 = vmatprep.mubr.f32.mxu0 0.0
        %1020 = vmatmul.mubr.f32.gmra.mrb[0].mxu0 %v936
        %v1021 = vpop.f32.mrb[0].mxu0
        %v1022 = vadd.f32 %v918, %v1021
        %v1023 = vpop.f32.mrb[0].mxu0
        %1024 = vmatprep.mubr.f32.mxu0 0.0
        %1025 = vmatmul.mubr.f32.gmra.mrb[0].mxu0 %v938
        %v1026 = vpop.f32.mrb[0].mxu0
        %v1027 = vadd.f32 %v919, %v1026
        %v1028 = vpop.f32.mrb[0].mxu0
        %1029 = vmatprep.mubr.f32.mxu0 0.0
        %1030 = vmatmul.mubr.f32.gmra.mrb[0].mxu0 %v940
        %v1031 = vpop.f32.mrb[0].mxu0
        %v1032 = vadd.f32 %v920, %v1031
        %v1033 = vpop.f32.mrb[0].mxu0
        %1034 = vdwg.mxu0
        %v1035 = vsel %vm933, %v1017, -inf
        %1036 = vmax.xlane.f32.xlu0 %v1035
        %v1037 = vpop.xlane.xlu0 %1036
        %v1038 = vsel %vm933, %v1022, -inf
        %1039 = vmax.xlane.f32.xlu0 %v1038
        %v1040 = vpop.xlane.xlu0 %1039
        %v1041 = vsel %vm933, %v1027, -inf
        %1042 = vmax.xlane.f32.xlu0 %v1041
        %v1043 = vpop.xlane.xlu0 %1042
        %v1044 = vsel %vm933, %v1032, -inf
        %1045 = vmax.xlane.f32.xlu0 %v1044
        %v1046 = vpop.xlane.xlu0 %1045
        %v1047 = vsub.f32 %v1017, %v1037
        %v1048 = vsub.f32 %v1022, %v1040
        %v1049 = vsub.f32 %v1027, %v1043
        %v1050 = vsub.f32 %v1032, %v1046
        %v1051 = vmul.f32 %v1047, 1.442695
        %v1052 = vpow.pop %v1051
        %v1053 = vmul.f32 %v1048, 1.442695
        %v1054 = vpow.pop %v1053
        %v1055 = vmul.f32 %v1049, 1.442695
        %v1056 = vpow.pop %v1055
        %v1057 = vmul.f32 %v1050, 1.442695
        %v1058 = vpow.pop %v1057
        %v1059 = vsel %vm933, %v1052, 0.0
        %1060 = vadd.xlane.f32.xlu0 %v1059
        %v1061 = vpop.xlane.xlu0 %1060
        %v1062 = vsel %vm933, %v1054, 0.0
        %1063 = vadd.xlane.f32.xlu0 %v1062
        %v1064 = vpop.xlane.xlu0 %1063
        %v1065 = vsel %vm933, %v1056, 0.0
        %1066 = vadd.xlane.f32.xlu0 %v1065
        %v1067 = vpop.xlane.xlu0 %1066
        %v1068 = vsel %vm933, %v1058, 0.0
        %1069 = vadd.xlane.f32.xlu0 %v1068
        %v1070 = vpop.xlane.xlu0 %1069
        %v1071 = vrcp.pop %v1061
        %v1072 = vrcp.pop %v1064
        %v1073 = vrcp.pop %v1067
        %v1074 = vrcp.pop %v1070
        %v1075 = vmul.f32 %v1052, %v1071
        %v1076 = vmul.f32 %v1054, %v1072
        %v1077 = vmul.f32 %v1056, %v1073
        %v1078 = vmul.f32 %v1058, %v1074
        %v1080 = vsel %vm933, %v1075, 0
        %v1083 = vsel %vm933, %v1076, 0
        %v1086 = vsel %vm933, %v1077, 0
        %v1089 = vsel %vm933, %v1078, 0
        %1091 = vmatprep.subr.mxu0 0.0
        %1092 = vmatpush1.msra.mxu0 %v780
        %1093 = vmatprep.subr.mxu0 0.0
        %1094 = vmatpush1.msra.mxu0 %v784
        %1095 = vmatprep.subr.mxu0 0.0
        %1096 = vmatpush1.msra.mxu0 %v790
        %1097 = vmatprep.subr.mxu0 0.0
        %1098 = vmatpush1.msra.mxu0 %v794
        %1099 = vmatprep.subr.mxu0 0.0
        %1100 = vmatpush1.msra.mxu0 0.0
        %1101 = vmatprep.subr.mxu0 0.0
        %1102 = vmatpush1.msra.mxu0 0.0
        %1103 = vmatprep.subr.mxu0 0.0
        %1104 = vmatpush1.msra.mxu0 0.0
        %1105 = vmatprep.subr.mxu0 0.0
        %1106 = vmatpush1.msra.mxu0 0.0
        %1107 = vmatprep.subr.mxu0 0.0
        %1108 = vmatpush1.msra.mxu0 0.0
        %1109 = vmatprep.subr.mxu0 0.0
        %1110 = vmatpush1.msra.mxu0 0.0
        %1111 = vmatprep.subr.mxu0 0.0
        %1112 = vmatpush1.msra.mxu0 0.0
        %1113 = vmatprep.subr.mxu0 0.0
        %1114 = vmatpush1.msra.mxu0 0.0
        %1115 = vmatprep.subr.mxu0 0.0
        %1116 = vmatpush1.msra.mxu0 0.0
        %1117 = vmatprep.subr.mxu0 0.0
        %1118 = vmatpush1.msra.mxu0 0.0
        %1119 = vmatprep.subr.mxu0 0.0
        %1120 = vmatpush1.msra.mxu0 0.0
        %1121 = vmatprep.subr.mxu0 0.0
        %1122 = vmatpush1.msra.mxu0 0.0
        %1123 = vmatprep.subr.mxu0 0.0
        %1124 = vmatpush1.msra.mxu0 0.0
        %1125 = vmatprep.subr.mxu0 0.0
        %1126 = vmatpush1.msra.mxu0 0.0
        %1127 = vmatprep.subr.mxu0 0.0
        %1128 = vmatpush1.msra.mxu0 0.0
        %1129 = vmatprep.subr.mxu0 0.0
        %1130 = vmatpush1.msra.mxu0 0.0
        %1131 = vmatprep.subr.mxu0 0.0
        %1132 = vmatpush1.msra.mxu0 0.0
        %1133 = vmatprep.subr.mxu0 0.0
        %1134 = vmatpush1.msra.mxu0 0.0
        %1135 = vmatprep.subr.mxu0 0.0
        %1136 = vmatpush1.msra.mxu0 0.0
        %1137 = vmatprep.subr.mxu0 0.0
        %1138 = vmatpush1.msra.mxu0 0.0
        %1139 = vmatprep.subr.mxu0 0.0
        %1140 = vmatpush1.msra.mxu0 0.0
        %1141 = vmatprep.subr.mxu0 0.0
        %1142 = vmatpush1.msra.mxu0 0.0
        %1143 = vmatprep.subr.mxu0 0.0
        %1144 = vmatpush1.msra.mxu0 0.0
        %1145 = vmatprep.subr.mxu0 0.0
        %1146 = vmatpush1.msra.mxu0 0.0
        %1147 = vmatprep.subr.mxu0 0.0
        %1148 = vmatpush1.msra.mxu0 0.0
        %1149 = vmatprep.subr.mxu0 0.0
        %1150 = vmatpush1.msra.mxu0 0.0
        %1151 = vmatprep.subr.mxu0 0.0
        %1152 = vmatpush1.msra.mxu0 0.0
        %1153 = vmatprep.subr.mxu0 0.0
        %1154 = vmatpush1.msra.mxu0 0.0
        %1155 = vmatprep.mubr.f32.mxu0 0.0
        %1156 = vmatmul.mubr.f32.gmra.mrb[0].mxu0 %v1080
        %v1157 = vpop.f32.mrb[0].mxu0
        %v1158 = vadd.f32 0.0, %v1157
        %v1159 = vpop.f32.mrb[0].mxu0
        %1160 = vmatprep.mubr.f32.mxu0 0.0
        %1161 = vmatmul.mubr.f32.gmra.mrb[0].mxu0 %v1083
        %v1162 = vpop.f32.mrb[0].mxu0
        %v1163 = vadd.f32 0.0, %v1162
        %v1164 = vpop.f32.mrb[0].mxu0
        %1165 = vmatprep.mubr.f32.mxu0 0.0
        %1166 = vmatmul.mubr.f32.gmra.mrb[0].mxu0 %v1086
        %v1167 = vpop.f32.mrb[0].mxu0
        %v1168 = vadd.f32 0.0, %v1167
        %v1169 = vpop.f32.mrb[0].mxu0
        %1170 = vmatprep.mubr.f32.mxu0 0.0
        %1171 = vmatmul.mubr.f32.gmra.mrb[0].mxu0 %v1089
        %v1172 = vpop.f32.mrb[0].mxu0
        %v1173 = vadd.f32 0.0, %v1172
        %v1174 = vpop.f32.mrb[0].mxu0
        %1175 = vdwg.mxu0
        %1176 = vst.msk [vmem:[#allocation3] sm:$0xff] %vm933, %v1158
        %1177 = vst.msk [vmem:[#allocation3 + $0x8] sm:$0xff] %vm933, %v1163
        %1178 = vst.msk [vmem:[#allocation3 + $0x10] sm:$0xff] %vm933, %v1168
        %1179 = vst.msk [vmem:[#allocation3 + $0x18] sm:$0xff] %vm933, %v1173
        %1180 = vrot.lane.b32.xlu0 %v913, 96
        %v1181 = vpop.permute.xlu0 %1180
        %1182 = vrot.lane.b32.xlu0 %v914, 96
        %v1183 = vpop.permute.xlu0 %1182
        %1184 = vrot.lane.b32.xlu0 %v915, 96
        %v1185 = vpop.permute.xlu0 %1184
        %1186 = vrot.lane.b32.xlu0 %v916, 96
        %v1187 = vpop.permute.xlu0 %1186
        %1188 = vrot.lane.b32.xlu0 %v913, 32
        %v1189 = vpop.permute.xlu0 %1188
        %1190 = vrot.lane.b32.xlu0 %v914, 32
        %v1191 = vpop.permute.xlu0 %1190
        %1192 = vrot.lane.b32.xlu0 %v915, 32
        %v1193 = vpop.permute.xlu0 %1192
        %1194 = vrot.lane.b32.xlu0 %v916, 32
        %v1195 = vpop.permute.xlu0 %1194
        %v1196 = vsel %vm933, %v1181, 0
        %v1198 = vsel %vm933, %v1183, 0
        %v1200 = vsel %vm933, %v1185, 0
        %v1202 = vsel %vm933, %v1187, 0
        %v1204 = vsel %vm933, %v1189, 0
        %v1206 = vsel %vm933, %v1191, 0
        %v1208 = vsel %vm933, %v1193, 0
        %v1210 = vsel %vm933, %v1195, 0
        %1212 = vmatprep.subr.mxu0 0.0
        %1213 = vmatpush1.xpose.msra.mxu0 %v1204
        %1214 = vmatprep.subr.mxu0 0.0
        %1215 = vmatpush1.xpose.msra.mxu0 %v1206
        %1216 = vmatprep.subr.mxu0 0.0
        %1217 = vmatpush1.xpose.msra.mxu0 %v1208
        %1218 = vmatprep.subr.mxu0 0.0
        %1219 = vmatpush1.xpose.msra.mxu0 %v1210
        %1220 = vmatprep.subr.mxu0 0.0
        %1221 = vmatpush1.xpose.msra.mxu0 0.0
        %1222 = vmatprep.subr.mxu0 0.0
        %1223 = vmatpush1.xpose.msra.mxu0 0.0
        %1224 = vmatprep.subr.mxu0 0.0
        %1225 = vmatpush1.xpose.msra.mxu0 0.0
        %1226 = vmatprep.subr.mxu0 0.0
        %1227 = vmatpush1.xpose.msra.mxu0 0.0
        %1228 = vmatprep.subr.mxu0 0.0
        %1229 = vmatpush1.xpose.msra.mxu0 0.0
        %1230 = vmatprep.subr.mxu0 0.0
        %1231 = vmatpush1.xpose.msra.mxu0 0.0
        %1232 = vmatprep.subr.mxu0 0.0
        %1233 = vmatpush1.xpose.msra.mxu0 0.0
        %1234 = vmatprep.subr.mxu0 0.0
        %1235 = vmatpush1.xpose.msra.mxu0 0.0
        %1236 = vmatprep.subr.mxu0 0.0
        %1237 = vmatpush1.xpose.msra.mxu0 0.0
        %1238 = vmatprep.subr.mxu0 0.0
        %1239 = vmatpush1.xpose.msra.mxu0 0.0
        %1240 = vmatprep.subr.mxu0 0.0
        %1241 = vmatpush1.xpose.msra.mxu0 0.0
        %1242 = vmatprep.subr.mxu0 0.0
        %1243 = vmatpush1.xpose.msra.mxu0 0.0
        %1244 = vmatprep.subr.mxu0 0.0
        %1245 = vmatpush1.xpose.msra.mxu0 0.0
        %1246 = vmatprep.subr.mxu0 0.0
        %1247 = vmatpush1.xpose.msra.mxu0 0.0
        %1248 = vmatprep.subr.mxu0 0.0
        %1249 = vmatpush1.xpose.msra.mxu0 0.0
        %1250 = vmatprep.subr.mxu0 0.0
        %1251 = vmatpush1.xpose.msra.mxu0 0.0
        %1252 = vmatprep.subr.mxu0 0.0
        %1253 = vmatpush1.xpose.msra.mxu0 0.0
        %1254 = vmatprep.subr.mxu0 0.0
        %1255 = vmatpush1.xpose.msra.mxu0 0.0
        %1256 = vmatprep.subr.mxu0 0.0
        %1257 = vmatpush1.xpose.msra.mxu0 0.0
        %1258 = vmatprep.subr.mxu0 0.0
        %1259 = vmatpush1.xpose.msra.mxu0 0.0
        %1260 = vmatprep.subr.mxu0 0.0
        %1261 = vmatpush1.xpose.msra.mxu0 0.0
        %1262 = vmatprep.subr.mxu0 0.0
        %1263 = vmatpush1.xpose.msra.mxu0 0.0
        %1264 = vmatprep.subr.mxu0 0.0
        %1265 = vmatpush1.xpose.msra.mxu0 0.0
        %1266 = vmatprep.subr.mxu0 0.0
        %1267 = vmatpush1.xpose.msra.mxu0 0.0
        %1268 = vmatprep.subr.mxu0 0.0
        %1269 = vmatpush1.xpose.msra.mxu0 0.0
        %1270 = vmatprep.subr.mxu0 0.0
        %1271 = vmatpush1.xpose.msra.mxu0 0.0
        %1272 = vmatprep.subr.mxu0 0.0
        %1273 = vmatpush1.xpose.msra.mxu0 0.0
        %1274 = vmatprep.subr.mxu0 0.0
        %1275 = vmatpush1.xpose.msra.mxu0 0.0
        %1276 = vmatprep.mubr.f32.mxu0 0.0
        %1277 = vmatmul.mubr.f32.gmra.mrb[0].mxu0 %v1196
        %v1278 = vpop.f32.mrb[0].mxu0
        %v1279 = vadd.f32 %v917, %v1278
        %v1280 = vpop.f32.mrb[0].mxu0
        %1281 = vmatprep.mubr.f32.mxu0 0.0
        %1282 = vmatmul.mubr.f32.gmra.mrb[0].mxu0 %v1198
        %v1283 = vpop.f32.mrb[0].mxu0
        %v1284 = vadd.f32 %v918, %v1283
        %v1285 = vpop.f32.mrb[0].mxu0
        %1286 = vmatprep.mubr.f32.mxu0 0.0
        %1287 = vmatmul.mubr.f32.gmra.mrb[0].mxu0 %v1200
        %v1288 = vpop.f32.mrb[0].mxu0
        %v1289 = vadd.f32 %v919, %v1288
        %v1290 = vpop.f32.mrb[0].mxu0
        %1291 = vmatprep.mubr.f32.mxu0 0.0
        %1292 = vmatmul.mubr.f32.gmra.mrb[0].mxu0 %v1202
        %v1293 = vpop.f32.mrb[0].mxu0
        %v1294 = vadd.f32 %v920, %v1293
        %v1295 = vpop.f32.mrb[0].mxu0
        %1296 = vdwg.mxu0
        %v1297 = vsel %vm933, %v1279, -inf
        %1298 = vmax.xlane.f32.xlu0 %v1297
        %v1299 = vpop.xlane.xlu0 %1298
        %v1300 = vsel %vm933, %v1284, -inf
        %1301 = vmax.xlane.f32.xlu0 %v1300
        %v1302 = vpop.xlane.xlu0 %1301
        %v1303 = vsel %vm933, %v1289, -inf
        %1304 = vmax.xlane.f32.xlu0 %v1303
        %v1305 = vpop.xlane.xlu0 %1304
        %v1306 = vsel %vm933, %v1294, -inf
        %1307 = vmax.xlane.f32.xlu0 %v1306
        %v1308 = vpop.xlane.xlu0 %1307
        %v1309 = vsub.f32 %v1279, %v1299
        %v1310 = vsub.f32 %v1284, %v1302
        %v1311 = vsub.f32 %v1289, %v1305
        %v1312 = vsub.f32 %v1294, %v1308
        %v1313 = vmul.f32 %v1309, 1.442695
        %v1314 = vpow.pop %v1313
        %v1315 = vmul.f32 %v1310, 1.442695
        %v1316 = vpow.pop %v1315
        %v1317 = vmul.f32 %v1311, 1.442695
        %v1318 = vpow.pop %v1317
        %v1319 = vmul.f32 %v1312, 1.442695
        %v1320 = vpow.pop %v1319
        %v1321 = vsel %vm933, %v1314, 0.0
        %1322 = vadd.xlane.f32.xlu0 %v1321
        %v1323 = vpop.xlane.xlu0 %1322
        %v1324 = vsel %vm933, %v1316, 0.0
        %1325 = vadd.xlane.f32.xlu0 %v1324
        %v1326 = vpop.xlane.xlu0 %1325
        %v1327 = vsel %vm933, %v1318, 0.0
        %1328 = vadd.xlane.f32.xlu0 %v1327
        %v1329 = vpop.xlane.xlu0 %1328
        %v1330 = vsel %vm933, %v1320, 0.0
        %1331 = vadd.xlane.f32.xlu0 %v1330
        %v1332 = vpop.xlane.xlu0 %1331
        %v1333 = vrcp.pop %v1323
        %v1334 = vrcp.pop %v1326
        %v1335 = vrcp.pop %v1329
        %v1336 = vrcp.pop %v1332
        %v1337 = vmul.f32 %v1314, %v1333
        %v1338 = vmul.f32 %v1316, %v1334
        %v1339 = vmul.f32 %v1318, %v1335
        %v1340 = vmul.f32 %v1320, %v1336
        %1345 = vrot.lane.b32.xlu0 %v780, 96
        %v1346 = vpop.permute.xlu0 %1345
        %1347 = vrot.lane.b32.xlu0 %v784, 96
        %v1348 = vpop.permute.xlu0 %1347
        %1349 = vrot.lane.b32.xlu0 %v790, 96
        %v1350 = vpop.permute.xlu0 %1349
        %1351 = vrot.lane.b32.xlu0 %v794, 96
        %v1352 = vpop.permute.xlu0 %1351
        %v1358 = vsel %vm933, %v1337, 0
        %v1361 = vsel %vm933, %v1338, 0
        %v1364 = vsel %vm933, %v1339, 0
        %v1367 = vsel %vm933, %v1340, 0
        %1369 = vmatprep.subr.mxu0 0.0
        %1370 = vmatpush1.msra.mxu0 %v1346
        %1371 = vmatprep.subr.mxu0 0.0
        %1372 = vmatpush1.msra.mxu0 %v1348
        %1373 = vmatprep.subr.mxu0 0.0
        %1374 = vmatpush1.msra.mxu0 %v1350
        %1375 = vmatprep.subr.mxu0 0.0
        %1376 = vmatpush1.msra.mxu0 %v1352
        %1377 = vmatprep.subr.mxu0 0.0
        %1378 = vmatpush1.msra.mxu0 0.0
        %1379 = vmatprep.subr.mxu0 0.0
        %1380 = vmatpush1.msra.mxu0 0.0
        %1381 = vmatprep.subr.mxu0 0.0
        %1382 = vmatpush1.msra.mxu0 0.0
        %1383 = vmatprep.subr.mxu0 0.0
        %1384 = vmatpush1.msra.mxu0 0.0
        %1385 = vmatprep.subr.mxu0 0.0
        %1386 = vmatpush1.msra.mxu0 0.0
        %1387 = vmatprep.subr.mxu0 0.0
        %1388 = vmatpush1.msra.mxu0 0.0
        %1389 = vmatprep.subr.mxu0 0.0
        %1390 = vmatpush1.msra.mxu0 0.0
        %1391 = vmatprep.subr.mxu0 0.0
        %1392 = vmatpush1.msra.mxu0 0.0
        %1393 = vmatprep.subr.mxu0 0.0
        %1394 = vmatpush1.msra.mxu0 0.0
        %1395 = vmatprep.subr.mxu0 0.0
        %1396 = vmatpush1.msra.mxu0 0.0
        %1397 = vmatprep.subr.mxu0 0.0
        %1398 = vmatpush1.msra.mxu0 0.0
        %1399 = vmatprep.subr.mxu0 0.0
        %1400 = vmatpush1.msra.mxu0 0.0
        %1401 = vmatprep.subr.mxu0 0.0
        %1402 = vmatpush1.msra.mxu0 0.0
        %1403 = vmatprep.subr.mxu0 0.0
        %1404 = vmatpush1.msra.mxu0 0.0
        %1405 = vmatprep.subr.mxu0 0.0
        %1406 = vmatpush1.msra.mxu0 0.0
        %1407 = vmatprep.subr.mxu0 0.0
        %1408 = vmatpush1.msra.mxu0 0.0
        %1409 = vmatprep.subr.mxu0 0.0
        %1410 = vmatpush1.msra.mxu0 0.0
        %1411 = vmatprep.subr.mxu0 0.0
        %1412 = vmatpush1.msra.mxu0 0.0
        %1413 = vmatprep.subr.mxu0 0.0
        %1414 = vmatpush1.msra.mxu0 0.0
        %1415 = vmatprep.subr.mxu0 0.0
        %1416 = vmatpush1.msra.mxu0 0.0
        %1417 = vmatprep.subr.mxu0 0.0
        %1418 = vmatpush1.msra.mxu0 0.0
        %1419 = vmatprep.subr.mxu0 0.0
        %1420 = vmatpush1.msra.mxu0 0.0
        %1421 = vmatprep.subr.mxu0 0.0
        %1422 = vmatpush1.msra.mxu0 0.0
        %1423 = vmatprep.subr.mxu0 0.0
        %1424 = vmatpush1.msra.mxu0 0.0
        %1425 = vmatprep.subr.mxu0 0.0
        %1426 = vmatpush1.msra.mxu0 0.0
        %1427 = vmatprep.subr.mxu0 0.0
        %1428 = vmatpush1.msra.mxu0 0.0
        %1429 = vmatprep.subr.mxu0 0.0
        %1430 = vmatpush1.msra.mxu0 0.0
        %1431 = vmatprep.subr.mxu0 0.0
        %1432 = vmatpush1.msra.mxu0 0.0
        %1433 = vmatprep.mubr.f32.mxu0 0.0
        %1434 = vmatmul.mubr.f32.gmra.mrb[0].mxu0 %v1358
        %v1435 = vpop.f32.mrb[0].mxu0
        %v1436 = vadd.f32 0.0, %v1435
        %v1437 = vpop.f32.mrb[0].mxu0
        %1438 = vmatprep.mubr.f32.mxu0 0.0
        %1439 = vmatmul.mubr.f32.gmra.mrb[0].mxu0 %v1361
        %v1440 = vpop.f32.mrb[0].mxu0
        %v1441 = vadd.f32 0.0, %v1440
        %v1442 = vpop.f32.mrb[0].mxu0
        %1443 = vmatprep.mubr.f32.mxu0 0.0
        %1444 = vmatmul.mubr.f32.gmra.mrb[0].mxu0 %v1364
        %v1445 = vpop.f32.mrb[0].mxu0
        %v1446 = vadd.f32 0.0, %v1445
        %v1447 = vpop.f32.mrb[0].mxu0
        %1448 = vmatprep.mubr.f32.mxu0 0.0
        %1449 = vmatmul.mubr.f32.gmra.mrb[0].mxu0 %v1367
        %v1450 = vpop.f32.mrb[0].mxu0
        %v1451 = vadd.f32 0.0, %v1450
        %v1452 = vpop.f32.mrb[0].mxu0
        %1453 = vdwg.mxu0
        %1458 = vrot.lane.b32.xlu0 %v1436, 32
        %v1459 = vpop.permute.xlu0 %1458
        %1460 = vrot.lane.b32.xlu0 %v1441, 32
        %v1461 = vpop.permute.xlu0 %1460
        %1462 = vrot.lane.b32.xlu0 %v1446, 32
        %v1463 = vpop.permute.xlu0 %1462
        %1464 = vrot.lane.b32.xlu0 %v1451, 32
        %v1465 = vpop.permute.xlu0 %1464
        %vm1470 = vcmask 523520
        %1471 = vst.msk [vmem:[#allocation3] sm:$0xff] %vm1470, %v1459
        %1472 = vst.msk [vmem:[#allocation3 + $0x8] sm:$0xff] %vm1470, %v1461
        %1473 = vst.msk [vmem:[#allocation3 + $0x10] sm:$0xff] %vm1470, %v1463
        %1474 = vst.msk [vmem:[#allocation3 + $0x18] sm:$0xff] %vm1470, %v1465
        %v1475 = vld [vmem:[#allocation3] sm:$0xff]
        %v1476 = vld [vmem:[#allocation3 + $0x8] sm:$0xff]
        %v1477 = vld [vmem:[#allocation3 + $0x10] sm:$0xff]
        %v1478 = vld [vmem:[#allocation3 + $0x18] sm:$0xff]
        %v1479 = vpack.c.bf16 %v1476, %v1475
        %v1480 = vpack.c.bf16 %v1478, %v1477
        %v1481 = vld [vmem:[%s598] sm:$0xf]
        %v1482 = vld [vmem:[%s598 + $0x4] sm:$0xf]
        %v1483 = vld [vmem:[%s598 + $0x8] sm:$0xf]
        %v1484 = vld [vmem:[%s598 + $0xc] sm:$0xf]
        %v1485 = vld [vmem:[%s598 + $0x10] sm:$0xf]
        %v1486 = vld [vmem:[%s598 + $0x14] sm:$0xf]
        %v1487 = vld [vmem:[%s598 + $0x18] sm:$0xf]
        %v1488 = vld [vmem:[%s598 + $0x1c] sm:$0xf]
        %v1497 = vunpack.c.l.b16 %v1481
        %v1498 = vunpack.c.l.b16 %v1482
        %v1499 = vunpack.c.l.b16 %v1483
        %v1500 = vunpack.c.l.b16 %v1484
        %v1501 = vunpack.c.l.b16 %v1485
        %v1502 = vunpack.c.l.b16 %v1486
        %v1503 = vunpack.c.l.b16 %v1487
        %v1504 = vunpack.c.l.b16 %v1488
        %v1505 = vpack.c.b16 %v1498, %v1497
        %v1506 = vpack.c.b16 %v1500, %v1499
        %v1507 = vpack.c.b16 %v1502, %v1501
        %v1508 = vpack.c.b16 %v1504, %v1503
        %v1514 = vsel %vm634, %v1479, 0
        %v1517 = vsel %vm634, %v1480, 0
        %1519 = vmatprep.subr.bf16.mxu0 0
        %1520 = vmatpush1.bf16.msra.mxu0 %v1505
        %1521 = vmatprep.subr.bf16.mxu0 0
        %1522 = vmatpush1.bf16.msra.mxu0 %v1506
        %1523 = vmatprep.subr.bf16.mxu0 0
        %1524 = vmatpush1.bf16.msra.mxu0 %v1507
        %1525 = vmatprep.subr.bf16.mxu0 0
        %1526 = vmatpush1.bf16.msra.mxu0 %v1508
        %1527 = vmatprep.subr.bf16.mxu0 0
        %1528 = vmatpush1.bf16.msra.mxu0 0
        %1529 = vmatprep.subr.bf16.mxu0 0
        %1530 = vmatpush1.bf16.msra.mxu0 0
        %1531 = vmatprep.subr.bf16.mxu0 0
        %1532 = vmatpush1.bf16.msra.mxu0 0
        %1533 = vmatprep.subr.bf16.mxu0 0
        %1534 = vmatpush1.bf16.msra.mxu0 0
        %1535 = vmatprep.subr.bf16.mxu0 0
        %1536 = vmatpush1.bf16.msra.mxu0 0
        %1537 = vmatprep.subr.bf16.mxu0 0
        %1538 = vmatpush1.bf16.msra.mxu0 0
        %1539 = vmatprep.subr.bf16.mxu0 0
        %1540 = vmatpush1.bf16.msra.mxu0 0
        %1541 = vmatprep.subr.bf16.mxu0 0
        %1542 = vmatpush1.bf16.msra.mxu0 0
        %1543 = vmatprep.subr.bf16.mxu0 0
        %1544 = vmatpush1.bf16.msra.mxu0 0
        %1545 = vmatprep.subr.bf16.mxu0 0
        %1546 = vmatpush1.bf16.msra.mxu0 0
        %1547 = vmatprep.subr.bf16.mxu0 0
        %1548 = vmatpush1.bf16.msra.mxu0 0
        %1549 = vmatprep.subr.bf16.mxu0 0
        %1550 = vmatpush1.bf16.msra.mxu0 0
        %1551 = vmatprep.mubr.bf16.mxu0 0
        %1552 = vmatmul.mubr.bf16.gmra.mrb[0].mxu0 %v1514
        %v1553 = vpop.f32.mrb[0].mxu0
        %v1554 = vadd.f32 0.0, %v1553
        %v1555 = vpop.f32.mrb[0].mxu0
        %v1556 = vpop.f32.mrb[0].mxu0
        %v1557 = vadd.f32 0.0, %v1556
        %v1558 = vpop.f32.mrb[0].mxu0
        %1559 = vmatprep.mubr.bf16.mxu0 0
        %1560 = vmatmul.mubr.bf16.gmra.mrb[0].mxu0 %v1517
        %v1561 = vpop.f32.mrb[0].mxu0
        %v1562 = vadd.f32 0.0, %v1561
        %v1563 = vpop.f32.mrb[0].mxu0
        %v1564 = vpop.f32.mrb[0].mxu0
        %v1565 = vadd.f32 0.0, %v1564
        %v1566 = vpop.f32.mrb[0].mxu0
        %1567 = vdwg.mxu0
        %v1568 = vadd.f32 %v626, %v1554
        %v1569 = vadd.f32 %v627, %v1557
        %v1570 = vadd.f32 %v628, %v1562
        %v1571 = vadd.f32 %v629, %v1565
        %v1572 = vmul.f32 %v1568, %v1568
        %v1573 = vmul.f32 %v1569, %v1569
        %v1574 = vmul.f32 %v1570, %v1570
        %v1575 = vmul.f32 %v1571, %v1571
        %v1576 = vsel %vm634, %v1572, 0.0
        %1577 = vadd.xlane.f32.xlu0 %v1576
        %v1578 = vpop.xlane.xlu0 %1577
        %v1579 = vsel %vm634, %v1573, 0.0
        %1580 = vadd.xlane.f32.xlu0 %v1579
        %v1581 = vpop.xlane.xlu0 %1580
        %v1582 = vsel %vm634, %v1574, 0.0
        %1583 = vadd.xlane.f32.xlu0 %v1582
        %v1584 = vpop.xlane.xlu0 %1583
        %v1585 = vsel %vm634, %v1575, 0.0
        %1586 = vadd.xlane.f32.xlu0 %v1585
        %v1587 = vpop.xlane.xlu0 %1586
        %v1588 = vmul.f32 %v1578, %v647
        %v1589 = vmul.f32 %v1581, %v647
        %v1590 = vmul.f32 %v1584, %v647
        %v1591 = vmul.f32 %v1587, %v647
        %v1592 = vadd.f32 %v1588, 1e-06
        %v1593 = vadd.f32 %v1589, 1e-06
        %v1594 = vadd.f32 %v1590, 1e-06
        %v1595 = vadd.f32 %v1591, 1e-06
        %v1596 = vrsqrt.pop %v1592
        %v1597 = vrsqrt.pop %v1593
        %v1598 = vrsqrt.pop %v1594
        %v1599 = vrsqrt.pop %v1595
        %v1600 = vmul.f32 %v1568, %v1596
        %v1601 = vmul.f32 %v1569, %v1597
        %v1602 = vmul.f32 %v1570, %v1598
        %v1603 = vmul.f32 %v1571, %v1599
        %v1604 = vld [vmem:[%s601] sm:$0x1]
        %v1606 = vlaneseq
        %v1607 = vshrl.u32 %v1606, 7
        %v1608 = vsub.s32 0, %v1607
        %v1609 = vrot.slane %v1604, %v1608
        %v1611 = vmul.f32 %v1600, %v1609
        %v1612 = vmul.f32 %v1601, %v1609
        %v1613 = vmul.f32 %v1602, %v1609
        %v1614 = vmul.f32 %v1603, %v1609
        %v1615 = vpack.c.bf16 %v1612, %v1611
        %v1616 = vpack.c.bf16 %v1614, %v1613
        %v1617 = vld [vmem:[%s606] sm:$0xff]
        %v1618 = vld [vmem:[%s606 + $0x8] sm:$0xff]
        %v1619 = vld [vmem:[%s606 + $0x10] sm:$0xff]
        %v1620 = vld [vmem:[%s606 + $0x18] sm:$0xff]
        %v1621 = vld [vmem:[%s606 + $0x20] sm:$0xff]
        %v1622 = vld [vmem:[%s606 + $0x28] sm:$0xff]
        %v1623 = vld [vmem:[%s606 + $0x30] sm:$0xff]
        %v1624 = vld [vmem:[%s606 + $0x38] sm:$0xff]
        %v1633 = vunpack.c.l.b16 %v1617
        %v1634 = vunpack.c.h.b16 %v1617
        %v1635 = vunpack.c.l.b16 %v1618
        %v1636 = vunpack.c.h.b16 %v1618
        %v1637 = vunpack.c.l.b16 %v1619
        %v1638 = vunpack.c.h.b16 %v1619
        %v1639 = vunpack.c.l.b16 %v1620
        %v1640 = vunpack.c.h.b16 %v1620
        %v1641 = vunpack.c.l.b16 %v1621
        %v1642 = vunpack.c.h.b16 %v1621
        %v1643 = vunpack.c.l.b16 %v1622
        %v1644 = vunpack.c.h.b16 %v1622
        %v1645 = vunpack.c.l.b16 %v1623
        %v1646 = vunpack.c.h.b16 %v1623
        %v1647 = vunpack.c.l.b16 %v1624
        %v1648 = vunpack.c.h.b16 %v1624
        %v1649 = vpack.c.b16 %v1635, %v1633
        %v1650 = vpack.c.b16 %v1636, %v1634
        %v1651 = vpack.c.b16 %v1639, %v1637
        %v1652 = vpack.c.b16 %v1640, %v1638
        %v1653 = vpack.c.b16 %v1643, %v1641
        %v1654 = vpack.c.b16 %v1644, %v1642
        %v1655 = vpack.c.b16 %v1647, %v1645
        %v1656 = vpack.c.b16 %v1648, %v1646
        %v1666 = vsel %vm634, %v1615, 0
        %v1669 = vsel %vm634, %v1616, 0
        %1671 = vmatprep.subr.bf16.mxu0 %v1650
        %1672 = vmatpush1.bf16.msra.mxu0 %v1649
        %1673 = vmatprep.subr.bf16.mxu0 %v1652
        %1674 = vmatpush1.bf16.msra.mxu0 %v1651
        %1675 = vmatprep.subr.bf16.mxu0 %v1654
        %1676 = vmatpush1.bf16.msra.mxu0 %v1653
        %1677 = vmatprep.subr.bf16.mxu0 %v1656
        %1678 = vmatpush1.bf16.msra.mxu0 %v1655
        %1679 = vmatprep.subr.bf16.mxu0 0
        %1680 = vmatpush1.bf16.msra.mxu0 0
        %1681 = vmatprep.subr.bf16.mxu0 0
        %1682 = vmatpush1.bf16.msra.mxu0 0
        %1683 = vmatprep.subr.bf16.mxu0 0
        %1684 = vmatpush1.bf16.msra.mxu0 0
        %1685 = vmatprep.subr.bf16.mxu0 0
        %1686 = vmatpush1.bf16.msra.mxu0 0
        %1687 = vmatprep.subr.bf16.mxu0 0
        %1688 = vmatpush1.bf16.msra.mxu0 0
        %1689 = vmatprep.subr.bf16.mxu0 0
        %1690 = vmatpush1.bf16.msra.mxu0 0
        %1691 = vmatprep.subr.bf16.mxu0 0
        %1692 = vmatpush1.bf16.msra.mxu0 0
        %1693 = vmatprep.subr.bf16.mxu0 0
        %1694 = vmatpush1.bf16.msra.mxu0 0
        %1695 = vmatprep.subr.bf16.mxu0 0
        %1696 = vmatpush1.bf16.msra.mxu0 0
        %1697 = vmatprep.subr.bf16.mxu0 0
        %1698 = vmatpush1.bf16.msra.mxu0 0
        %1699 = vmatprep.subr.bf16.mxu0 0
        %1700 = vmatpush1.bf16.msra.mxu0 0
        %1701 = vmatprep.subr.bf16.mxu0 0
        %1702 = vmatpush1.bf16.msra.mxu0 0
        %1703 = vmatprep.mubr.bf16.mxu0 0
        %1704 = vmatmul.mubr.bf16.gmra.mrb[0].mxu0 %v1666
        %v1705 = vpop.f32.mrb[0].mxu0
        %v1706 = vadd.f32 0.0, %v1705
        %v1707 = vpop.f32.mrb[0].mxu0
        %v1708 = vadd.f32 0.0, %v1707
        %v1709 = vpop.f32.mrb[0].mxu0
        %v1710 = vadd.f32 0.0, %v1709
        %v1711 = vpop.f32.mrb[0].mxu0
        %v1712 = vadd.f32 0.0, %v1711
        %1713 = vmatprep.mubr.bf16.mxu0 0
        %1714 = vmatmul.mubr.bf16.gmra.mrb[0].mxu0 %v1669
        %v1715 = vpop.f32.mrb[0].mxu0
        %v1716 = vadd.f32 0.0, %v1715
        %v1717 = vpop.f32.mrb[0].mxu0
        %v1718 = vadd.f32 0.0, %v1717
        %v1719 = vpop.f32.mrb[0].mxu0
        %v1720 = vadd.f32 0.0, %v1719
        %v1721 = vpop.f32.mrb[0].mxu0
        %v1722 = vadd.f32 0.0, %v1721
        %1723 = vdwg.mxu0
        %v1724 = vxor.u32 %v1708, 2147483648
        %v1725 = vxor.u32 %v1712, 2147483648
        %v1726 = vxor.u32 %v1718, 2147483648
        %v1727 = vxor.u32 %v1722, 2147483648
        %v1728 = vmul.f32 %v1724, 1.442695
        %v1729 = vpow.pop %v1728
        %v1730 = vmul.f32 %v1725, 1.442695
        %v1731 = vpow.pop %v1730
        %v1732 = vmul.f32 %v1726, 1.442695
        %v1733 = vpow.pop %v1732
        %v1734 = vmul.f32 %v1727, 1.442695
        %v1735 = vpow.pop %v1734
        %v1736 = vadd.f32 %v1729, 1.0
        %v1737 = vadd.f32 %v1731, 1.0
        %v1738 = vadd.f32 %v1733, 1.0
        %v1739 = vadd.f32 %v1735, 1.0
        %v1740 = vrcp.pop %v1736
        %v1741 = vmul.f32 1.0, %v1740
        %v1742 = vrcp.pop %v1737
        %v1743 = vmul.f32 1.0, %v1742
        %v1744 = vrcp.pop %v1738
        %v1745 = vmul.f32 1.0, %v1744
        %v1746 = vrcp.pop %v1739
        %v1747 = vmul.f32 1.0, %v1746
        %v1748 = vmul.f32 %v1708, %v1741
        %v1749 = vmul.f32 %v1712, %v1743
        %v1750 = vmul.f32 %v1718, %v1745
        %v1751 = vmul.f32 %v1722, %v1747
        %v1752 = vmul.f32 %v1706, %v1748
        %v1753 = vmul.f32 %v1710, %v1749
        %v1754 = vmul.f32 %v1716, %v1750
        %v1755 = vmul.f32 %v1720, %v1751
        %v1756 = vpack.c.bf16 %v1753, %v1752
        %v1757 = vpack.c.bf16 %v1755, %v1754
        %v1758 = vld [vmem:[%s611] sm:$0xf]
        %v1759 = vld [vmem:[%s611 + $0x4] sm:$0xf]
        %v1760 = vld [vmem:[%s611 + $0x8] sm:$0xf]
        %v1761 = vld [vmem:[%s611 + $0xc] sm:$0xf]
        %v1762 = vld [vmem:[%s611 + $0x10] sm:$0xf]
        %v1763 = vld [vmem:[%s611 + $0x14] sm:$0xf]
        %v1764 = vld [vmem:[%s611 + $0x18] sm:$0xf]
        %v1765 = vld [vmem:[%s611 + $0x1c] sm:$0xf]
        %v1766 = vld [vmem:[%s611 + $0x20] sm:$0xf]
        %v1767 = vld [vmem:[%s611 + $0x24] sm:$0xf]
        %v1768 = vld [vmem:[%s611 + $0x28] sm:$0xf]
        %v1769 = vld [vmem:[%s611 + $0x2c] sm:$0xf]
        %v1770 = vld [vmem:[%s611 + $0x30] sm:$0xf]
        %v1771 = vld [vmem:[%s611 + $0x34] sm:$0xf]
        %v1772 = vld [vmem:[%s611 + $0x38] sm:$0xf]
        %v1773 = vld [vmem:[%s611 + $0x3c] sm:$0xf]
        %v1790 = vunpack.c.l.b16 %v1758
        %v1791 = vunpack.c.l.b16 %v1759
        %v1792 = vunpack.c.l.b16 %v1760
        %v1793 = vunpack.c.l.b16 %v1761
        %v1794 = vunpack.c.l.b16 %v1762
        %v1795 = vunpack.c.l.b16 %v1763
        %v1796 = vunpack.c.l.b16 %v1764
        %v1797 = vunpack.c.l.b16 %v1765
        %v1798 = vunpack.c.l.b16 %v1766
        %v1799 = vunpack.c.l.b16 %v1767
        %v1800 = vunpack.c.l.b16 %v1768
        %v1801 = vunpack.c.l.b16 %v1769
        %v1802 = vunpack.c.l.b16 %v1770
        %v1803 = vunpack.c.l.b16 %v1771
        %v1804 = vunpack.c.l.b16 %v1772
        %v1805 = vunpack.c.l.b16 %v1773
        %v1806 = vpack.c.b16 %v1791, %v1790
        %v1807 = vpack.c.b16 %v1793, %v1792
        %v1808 = vpack.c.b16 %v1795, %v1794
        %v1809 = vpack.c.b16 %v1797, %v1796
        %v1810 = vpack.c.b16 %v1799, %v1798
        %v1811 = vpack.c.b16 %v1801, %v1800
        %v1812 = vpack.c.b16 %v1803, %v1802
        %v1813 = vpack.c.b16 %v1805, %v1804
        %1822 = vmatprep.subr.bf16.mxu0 0
        %1823 = vmatpush1.bf16.msra.mxu0 %v1806
        %1824 = vmatprep.subr.bf16.mxu0 0
        %1825 = vmatpush1.bf16.msra.mxu0 %v1807
        %1826 = vmatprep.subr.bf16.mxu0 0
        %1827 = vmatpush1.bf16.msra.mxu0 %v1808
        %1828 = vmatprep.subr.bf16.mxu0 0
        %1829 = vmatpush1.bf16.msra.mxu0 %v1809
        %1830 = vmatprep.subr.bf16.mxu0 0
        %1831 = vmatpush1.bf16.msra.mxu0 %v1810
        %1832 = vmatprep.subr.bf16.mxu0 0
        %1833 = vmatpush1.bf16.msra.mxu0 %v1811
        %1834 = vmatprep.subr.bf16.mxu0 0
        %1835 = vmatpush1.bf16.msra.mxu0 %v1812
        %1836 = vmatprep.subr.bf16.mxu0 0
        %1837 = vmatpush1.bf16.msra.mxu0 %v1813
        %1838 = vmatprep.subr.bf16.mxu0 0
        %1839 = vmatpush1.bf16.msra.mxu0 0
        %1840 = vmatprep.subr.bf16.mxu0 0
        %1841 = vmatpush1.bf16.msra.mxu0 0
        %1842 = vmatprep.subr.bf16.mxu0 0
        %1843 = vmatpush1.bf16.msra.mxu0 0
        %1844 = vmatprep.subr.bf16.mxu0 0
        %1845 = vmatpush1.bf16.msra.mxu0 0
        %1846 = vmatprep.subr.bf16.mxu0 0
        %1847 = vmatpush1.bf16.msra.mxu0 0
        %1848 = vmatprep.subr.bf16.mxu0 0
        %1849 = vmatpush1.bf16.msra.mxu0 0
        %1850 = vmatprep.subr.bf16.mxu0 0
        %1851 = vmatpush1.bf16.msra.mxu0 0
        %1852 = vmatprep.subr.bf16.mxu0 0
        %1853 = vmatpush1.bf16.msra.mxu0 0
        %1854 = vmatprep.mubr.bf16.mxu0 0
        %1855 = vmatmul.mubr.bf16.gmra.mrb[0].mxu0 %v1756
        %v1856 = vpop.f32.mrb[0].mxu0
        %v1857 = vadd.f32 0.0, %v1856
        %v1858 = vpop.f32.mrb[0].mxu0
        %v1859 = vpop.f32.mrb[0].mxu0
        %v1860 = vadd.f32 0.0, %v1859
        %v1861 = vpop.f32.mrb[0].mxu0
        %1862 = vmatprep.mubr.bf16.mxu0 0
        %1863 = vmatmul.mubr.bf16.gmra.mrb[0].mxu0 %v1757
        %v1864 = vpop.f32.mrb[0].mxu0
        %v1865 = vadd.f32 0.0, %v1864
        %v1866 = vpop.f32.mrb[0].mxu0
        %v1867 = vpop.f32.mrb[0].mxu0
        %v1868 = vadd.f32 0.0, %v1867
        %v1869 = vpop.f32.mrb[0].mxu0
        %1870 = vdwg.mxu0
        %v1871 = vadd.f32 %v1568, %v1857
        %v1872 = vadd.f32 %v1569, %v1860
        %v1873 = vadd.f32 %v1570, %v1865
        %v1874 = vadd.f32 %v1571, %v1868
        %1875 = vst.msk [vmem:[#allocation2] sm:$0xff] %vm634, %v1871
        %1876 = vst.msk [vmem:[#allocation2 + $0x8] sm:$0xff] %vm634, %v1872
        %1877 = vst.msk [vmem:[#allocation2 + $0x10] sm:$0xff] %vm634, %v1873
        %1878 = vst.msk [vmem:[#allocation2 + $0x18] sm:$0xff] %vm634, %v1874
        %p1879 = scmp.eq.s32.totalorder %s30, 1
        // Predicated region
        $region85: #{qwenvl_vqa_forward.1} parent=79 // pred_check
          %p1880 = pneg %p1879
        $region86: #{qwenvl_vqa_forward.1} parent=79 // pred_check_branch
          %1882 = sbr.rel (%p1880) target = $region88
        $region87: #{qwenvl_vqa_forward.1} parent=79 // pred_region
          %v1883 = vmul.f32 %v1871, %v1871
          %v1884 = vmul.f32 %v1872, %v1872
          %v1885 = vmul.f32 %v1873, %v1873
          %v1886 = vmul.f32 %v1874, %v1874
          %v1887 = vsel %vm634, %v1883, 0.0
          %1888 = vadd.xlane.f32.xlu0 %v1887
          %v1889 = vpop.xlane.xlu0 %1888
          %v1890 = vsel %vm634, %v1884, 0.0
          %1891 = vadd.xlane.f32.xlu0 %v1890
          %v1892 = vpop.xlane.xlu0 %1891
          %v1893 = vsel %vm634, %v1885, 0.0
          %1894 = vadd.xlane.f32.xlu0 %v1893
          %v1895 = vpop.xlane.xlu0 %1894
          %v1896 = vsel %vm634, %v1886, 0.0
          %1897 = vadd.xlane.f32.xlu0 %v1896
          %v1898 = vpop.xlane.xlu0 %1897
          %v1899 = vmul.f32 %v1889, %v647
          %v1900 = vmul.f32 %v1892, %v647
          %v1901 = vmul.f32 %v1895, %v647
          %v1902 = vmul.f32 %v1898, %v647
          %v1903 = vadd.f32 %v1899, 1e-06
          %v1904 = vadd.f32 %v1900, 1e-06
          %v1905 = vadd.f32 %v1901, 1e-06
          %v1906 = vadd.f32 %v1902, 1e-06
          %v1907 = vrsqrt.pop %v1903
          %v1908 = vrsqrt.pop %v1904
          %v1909 = vrsqrt.pop %v1905
          %v1910 = vrsqrt.pop %v1906
          %v1911 = vmul.f32 %v1871, %v1907
          %v1912 = vmul.f32 %v1872, %v1908
          %v1913 = vmul.f32 %v1873, %v1909
          %v1914 = vmul.f32 %v1874, %v1910
          %v1915 = vld [vmem:[%s13] sm:$0x1]
          %v1917 = vlaneseq
          %v1918 = vshrl.u32 %v1917, 7
          %v1919 = vsub.s32 0, %v1918
          %v1920 = vrot.slane %v1915, %v1919
          %v1922 = vmul.f32 %v1911, %v1920
          %v1923 = vmul.f32 %v1912, %v1920
          %v1924 = vmul.f32 %v1913, %v1920
          %v1925 = vmul.f32 %v1914, %v1920
          %v1926 = vpack.c.bf16 %v1923, %v1922
          %v1927 = vpack.c.bf16 %v1925, %v1924
          %v1928 = vld [vmem:[%s14] sm:$0xf]
          %v1929 = vld [vmem:[%s14 + $0x4] sm:$0xf]
          %v1930 = vld [vmem:[%s14 + $0x8] sm:$0xf]
          %v1931 = vld [vmem:[%s14 + $0xc] sm:$0xf]
          %v1932 = vld [vmem:[%s14 + $0x10] sm:$0xf]
          %v1933 = vld [vmem:[%s14 + $0x14] sm:$0xf]
          %v1934 = vld [vmem:[%s14 + $0x18] sm:$0xf]
          %v1935 = vld [vmem:[%s14 + $0x1c] sm:$0xf]
          %v1944 = vunpack.c.l.b16 %v1928
          %v1945 = vunpack.c.l.b16 %v1929
          %v1946 = vunpack.c.l.b16 %v1930
          %v1947 = vunpack.c.l.b16 %v1931
          %v1948 = vunpack.c.l.b16 %v1932
          %v1949 = vunpack.c.l.b16 %v1933
          %v1950 = vunpack.c.l.b16 %v1934
          %v1951 = vunpack.c.l.b16 %v1935
          %v1952 = vpack.c.b16 %v1945, %v1944
          %v1953 = vpack.c.b16 %v1947, %v1946
          %v1954 = vpack.c.b16 %v1949, %v1948
          %v1955 = vpack.c.b16 %v1951, %v1950
          %v1961 = vsel %vm634, %v1926, 0
          %v1964 = vsel %vm634, %v1927, 0
          %1966 = vmatprep.subr.bf16.mxu0 0
          %1967 = vmatpush1.bf16.msra.mxu0 %v1952
          %1968 = vmatprep.subr.bf16.mxu0 0
          %1969 = vmatpush1.bf16.msra.mxu0 %v1953
          %1970 = vmatprep.subr.bf16.mxu0 0
          %1971 = vmatpush1.bf16.msra.mxu0 %v1954
          %1972 = vmatprep.subr.bf16.mxu0 0
          %1973 = vmatpush1.bf16.msra.mxu0 %v1955
          %1974 = vmatprep.subr.bf16.mxu0 0
          %1975 = vmatpush1.bf16.msra.mxu0 0
          %1976 = vmatprep.subr.bf16.mxu0 0
          %1977 = vmatpush1.bf16.msra.mxu0 0
          %1978 = vmatprep.subr.bf16.mxu0 0
          %1979 = vmatpush1.bf16.msra.mxu0 0
          %1980 = vmatprep.subr.bf16.mxu0 0
          %1981 = vmatpush1.bf16.msra.mxu0 0
          %1982 = vmatprep.subr.bf16.mxu0 0
          %1983 = vmatpush1.bf16.msra.mxu0 0
          %1984 = vmatprep.subr.bf16.mxu0 0
          %1985 = vmatpush1.bf16.msra.mxu0 0
          %1986 = vmatprep.subr.bf16.mxu0 0
          %1987 = vmatpush1.bf16.msra.mxu0 0
          %1988 = vmatprep.subr.bf16.mxu0 0
          %1989 = vmatpush1.bf16.msra.mxu0 0
          %1990 = vmatprep.subr.bf16.mxu0 0
          %1991 = vmatpush1.bf16.msra.mxu0 0
          %1992 = vmatprep.subr.bf16.mxu0 0
          %1993 = vmatpush1.bf16.msra.mxu0 0
          %1994 = vmatprep.subr.bf16.mxu0 0
          %1995 = vmatpush1.bf16.msra.mxu0 0
          %1996 = vmatprep.subr.bf16.mxu0 0
          %1997 = vmatpush1.bf16.msra.mxu0 0
          %1998 = vmatprep.mubr.bf16.mxu0 0
          %1999 = vmatmul.mubr.bf16.gmra.mrb[0].mxu0 %v1961
          %v2000 = vpop.f32.mrb[0].mxu0
          %v2001 = vadd.f32 0.0, %v2000
          %v2002 = vpop.f32.mrb[0].mxu0
          %v2003 = vpop.f32.mrb[0].mxu0
          %v2004 = vadd.f32 0.0, %v2003
          %v2005 = vpop.f32.mrb[0].mxu0
          %2006 = vmatprep.mubr.bf16.mxu0 0
          %2007 = vmatmul.mubr.bf16.gmra.mrb[0].mxu0 %v1964
          %v2008 = vpop.f32.mrb[0].mxu0
          %v2009 = vadd.f32 0.0, %v2008
          %v2010 = vpop.f32.mrb[0].mxu0
          %v2011 = vpop.f32.mrb[0].mxu0
          %v2012 = vadd.f32 0.0, %v2011
          %v2013 = vpop.f32.mrb[0].mxu0
          %2014 = vdwg.mxu0
          %v2015 = vpack.c.bf16 %v2004, %v2001
          %v2016 = vpack.c.bf16 %v2012, %v2009
          %v2019 = vunpack.c.l.b16 %v2015
          %v2020 = vunpack.c.h.b16 %v2015
          %v2021 = vunpack.c.l.b16 %v2016
          %v2022 = vunpack.c.h.b16 %v2016
          %v2023 = vpack.c.b16 %v2019, %v2019
          %v2024 = vpack.c.b16 %v2020, %v2020
          %v2025 = vpack.c.b16 %v2021, %v2021
          %v2026 = vpack.c.b16 %v2022, %v2022
          %2031 = vst [vmem:[#allocation4] sm:$0xf] %v2023
          %2032 = vst [vmem:[#allocation4 + $0x4] sm:$0xf] %v2024
          %2033 = vst [vmem:[#allocation4 + $0x8] sm:$0xf] %v2025
          %2034 = vst [vmem:[#allocation4 + $0xc] sm:$0xf] %v2026
          %v2035 = vld [vmem:[%s5] sm:$0xff]
          %v2036 = vld [vmem:[%s5 + $0x8] sm:$0xff]
          %v2037 = vld [vmem:[%s5 + $0x10] sm:$0xff]
          %v2038 = vld [vmem:[%s5 + $0x18] sm:$0xff]
          %2039 = vmax.xlane.f32.xlu0 %v2001
          %v2040 = vpop.xlane.xlu0 %2039
          %2041 = vmax.xlane.f32.xlu0 %v2004
          %v2042 = vpop.xlane.xlu0 %2041
          %2043 = vmax.xlane.f32.xlu0 %v2009
          %v2044 = vpop.xlane.xlu0 %2043
          %2045 = vmax.xlane.f32.xlu0 %v2012
          %v2046 = vpop.xlane.xlu0 %2045
          %v2047 = vsub.f32 %v2001, %v2040
          %v2048 = vsub.f32 %v2004, %v2042
          %v2049 = vsub.f32 %v2009, %v2044
          %v2050 = vsub.f32 %v2012, %v2046
          %v2051 = vmul.f32 %v2047, 1.442695
          %v2052 = vpow.pop %v2051
          %v2053 = vmul.f32 %v2048, 1.442695
          %v2054 = vpow.pop %v2053
          %v2055 = vmul.f32 %v2049, 1.442695
          %v2056 = vpow.pop %v2055
          %v2057 = vmul.f32 %v2050, 1.442695
          %v2058 = vpow.pop %v2057
          %2059 = vadd.xlane.f32.xlu0 %v2052
          %v2060 = vpop.xlane.xlu0 %2059
          %2061 = vadd.xlane.f32.xlu0 %v2054
          %v2062 = vpop.xlane.xlu0 %2061
          %2063 = vadd.xlane.f32.xlu0 %v2056
          %v2064 = vpop.xlane.xlu0 %2063
          %2065 = vadd.xlane.f32.xlu0 %v2058
          %v2066 = vpop.xlane.xlu0 %2065
          %v2067 = vlog2.pop %v2060
          %v2068 = vmul.f32 %v2067, 0.6931472
          %v2069 = vlog2.pop %v2062
          %v2070 = vmul.f32 %v2069, 0.6931472
          %v2071 = vlog2.pop %v2064
          %v2072 = vmul.f32 %v2071, 0.6931472
          %v2073 = vlog2.pop %v2066
          %v2074 = vmul.f32 %v2073, 0.6931472
          %v2075 = vadd.f32 %v2068, %v2040
          %v2076 = vadd.f32 %v2070, %v2042
          %v2077 = vadd.f32 %v2072, %v2044
          %v2078 = vadd.f32 %v2074, %v2046
          %v2079 = vlaneseq
          %v2080 = vand.u32 %v2079, 127
          %2081 = vset.pattern.permute.xlu0 0
          %2082 = vperm.xlu0 %2081, %v2035
          %v2083 = vpop.permute.xlu0 %2082
          %2084 = vset.pattern.permute.xlu0 0
          %2085 = vperm.xlu0 %2084, %v2036
          %v2086 = vpop.permute.xlu0 %2085
          %2087 = vset.pattern.permute.xlu0 0
          %2088 = vperm.xlu0 %2087, %v2037
          %v2089 = vpop.permute.xlu0 %2088
          %2090 = vset.pattern.permute.xlu0 0
          %2091 = vperm.xlu0 %2090, %v2038
          %v2092 = vpop.permute.xlu0 %2091
          %vm2093 = vcmp.eq.s32.totalorder %v2080, %v2083
          %vm2094 = vcmp.eq.s32.totalorder %v2080, %v2086
          %vm2095 = vcmp.eq.s32.totalorder %v2080, %v2089
          %vm2096 = vcmp.eq.s32.totalorder %v2080, %v2092
          %v2097 = vsel %vm2093, %v2001, 0.0
          %v2098 = vsel %vm2094, %v2004, 0.0
          %v2099 = vsel %vm2095, %v2009, 0.0
          %v2100 = vsel %vm2096, %v2012, 0.0
          %2101 = vadd.xlane.f32.xlu0 %v2097
          %v2102 = vpop.xlane.xlu0 %2101
          %2103 = vadd.xlane.f32.xlu0 %v2098
          %v2104 = vpop.xlane.xlu0 %2103
          %2105 = vadd.xlane.f32.xlu0 %v2099
          %v2106 = vpop.xlane.xlu0 %2105
          %2107 = vadd.xlane.f32.xlu0 %v2100
          %v2108 = vpop.xlane.xlu0 %2107
          %vm2109 = vcmp.ne.s32.totalorder %v2035, 4294967196
          %vm2110 = vcmp.ne.s32.totalorder %v2036, 4294967196
          %vm2111 = vcmp.ne.s32.totalorder %v2037, 4294967196
          %vm2112 = vcmp.ne.s32.totalorder %v2038, 4294967196
          %v2113 = vsel %vm2109, 1, 0
          %v2114 = vsel %vm2110, 1, 0
          %v2115 = vsel %vm2111, 1, 0
          %v2116 = vsel %vm2112, 1, 0
          %v2117 = vcvt.s32.f32 %v2113
          %v2118 = vcvt.s32.f32 %v2114
          %v2119 = vcvt.s32.f32 %v2115
          %v2120 = vcvt.s32.f32 %v2116
          %v2121 = vsub.f32 %v2075, %v2102
          %v2122 = vsub.f32 %v2076, %v2104
          %v2123 = vsub.f32 %v2077, %v2106
          %v2124 = vsub.f32 %v2078, %v2108
          %v2125 = vmul.f32 %v2121, %v2117
          %v2126 = vmul.f32 %v2122, %v2118
          %v2127 = vmul.f32 %v2123, %v2119
          %v2128 = vmul.f32 %v2124, %v2120
          %vm2129 = vcmask 7168
          %v2130 = vsel %vm2129, %v2125, 0.0
          %v2131 = vsel %vm2129, %v2126, 0.0
          %v2132 = vadd.f32 %v2130, %v2131
          %v2133 = vsel %vm2129, %v2127, 0.0
          %v2134 = vadd.f32 %v2132, %v2133
          %v2135 = vsel %vm2129, %v2128, 0.0
          %v2136 = vadd.f32 %v2134, %v2135
          %2137 = vadd.xlane.f32.xlu0 %v2136
          %v2138 = vpop.xlane.xlu0 %2137
          %v2139 = vrot.slane %v2138, 4
          %v2140 = vadd.f32 %v2138, %v2139
          %v2141 = vrot.slane %v2140, 2
          %v2142 = vadd.f32 %v2140, %v2141
          %v2143 = vrot.slane %v2142, 1
          %v2144 = vadd.f32 %v2142, %v2143
          %s2145 = vtos %v2144
          %v2146 = vstv %s2145
          %v2147 = vsel %vm2129, %v2117, 0.0
          %v2148 = vsel %vm2129, %v2118, 0.0
          %v2149 = vadd.f32 %v2147, %v2148
          %v2150 = vsel %vm2129, %v2119, 0.0
          %v2151 = vadd.f32 %v2149, %v2150
          %v2152 = vsel %vm2129, %v2120, 0.0
          %v2153 = vadd.f32 %v2151, %v2152
          %2154 = vadd.xlane.f32.xlu0 %v2153
          %v2155 = vpop.xlane.xlu0 %2154
          %v2156 = vrot.slane %v2155, 4
          %v2157 = vadd.f32 %v2155, %v2156
          %v2158 = vrot.slane %v2157, 2
          %v2159 = vadd.f32 %v2157, %v2158
          %v2160 = vrot.slane %v2159, 1
          %v2161 = vadd.f32 %v2159, %v2160
          %s2162 = vtos %v2161
          %v2163 = vstv %s2162
          %v2164 = vmax.f32 %v2163, 1.0
          %v2165 = vrcp.pop %v2164
          %v2166 = vmul.f32 %v2146, %v2165
          %vm2167 = vcmask 0
          %2168 = vst.msk [vmem:[#allocation6] sm:$0x1] %vm2167, %v2166
        $region88: #{qwenvl_vqa_forward.1} parent=79 // pred_fallthru
          _
        // Predicated region
        $region89: #{qwenvl_vqa_forward.1} parent=79 // pred_check
          %p2169 = pneg %p393
        $region90: #{qwenvl_vqa_forward.1} parent=79 // pred_check_branch
          %2171 = sbr.rel (%p2169) target = $region92
        $region91: #{qwenvl_vqa_forward.1} parent=79 // pred_region
          %s2173 = ssub.s32 256, 256
          %2174 = vsyncadd [#allocation5], %s2173
          %s2175 = sshll.u32 [#allocation4], 4
          %s2176 = int_to_ptr.vmem [resolvable:$true] %s2175
          %2181 = dma.vmem_to_hbm [thread:$0]  %s2176, 256, %s15, [#allocation5], 64, 64, 4
        $region92: #{qwenvl_vqa_forward.1} parent=79 // pred_fallthru
          _
        // Predicated region
        $region93: #{qwenvl_vqa_forward.1} parent=79 // pred_check
          %p2182 = pneg %p414
        $region94: #{qwenvl_vqa_forward.1} parent=79 // pred_check_branch
          %2184 = sbr.rel (%p2182) target = $region96
        $region95: #{qwenvl_vqa_forward.1} parent=79 // pred_region
          %s2186 = ssub.s32 16, 16
          %2187 = vsyncadd [#allocation7], %s2186
          %s2189 = sshll.u32 [#allocation6], 4
          %s2190 = int_to_ptr.vmem [resolvable:$true] %s2189
          %2192 = dma.vmem_to_hbm [thread:$0]  %s2190, 16, %s16, [#allocation7]
        $region96: #{qwenvl_vqa_forward.1} parent=79 // pred_fallthru
          _
        // Predicated region
        $region97: #{qwenvl_vqa_forward.1} parent=79 // pred_check
          %p2193 = pneg %p393
        $region98: #{qwenvl_vqa_forward.1} parent=79 // pred_check_branch
          %2195 = sbr.rel (%p2193) target = $region100
        $region99: #{qwenvl_vqa_forward.1} parent=79 // pred_region
          %2196 = dma.done [#allocation5], 256
        $region100: #{qwenvl_vqa_forward.1} parent=79 // pred_fallthru
          _
        // Predicated region
        $region101: #{qwenvl_vqa_forward.1} parent=79 // pred_check
          %p2197 = pneg %p414
        $region102: #{qwenvl_vqa_forward.1} parent=79 // pred_check_branch
          %2199 = sbr.rel (%p2197) target = $region104
        $region103: #{qwenvl_vqa_forward.1} parent=79 // pred_region
          %2200 = dma.done [#allocation7], 16
        $region104: #{qwenvl_vqa_forward.1} parent=79 // pred_fallthru
          _
      $region80: #{qwenvl_vqa_forward.1} parent=5 // pred_fallthru
        _
      %p2201 = scmp.le.s32.totalorder 2, %s25
      // Predicated region
      $region105: #{qwenvl_vqa_forward.1} parent=5 // pred_check
        %p2202 = pneg %p2201
      $region106: #{qwenvl_vqa_forward.1} parent=5 // pred_check_branch
        %2204 = sbr.rel (%p2202) target = $region108
      $region107: #{qwenvl_vqa_forward.1} parent=5 // pred_region
        %s2205 = ssub.s32 %s25, 2
      $region108: #{qwenvl_vqa_forward.1} parent=5 // pred_fallthru
        _
    $region6: #{qwenvl_vqa_forward.1} parent=1 // loop_footer
      %s29 = sadd.s32 1, %s25
    $region7: #{qwenvl_vqa_forward.1} parent=1 // loop_footer_branch
      %24 = sbr.rel target = $region3
    $region8: #{qwenvl_vqa_forward.1} parent=1 // loop_exit
      _
    %2206 = vsyncpa [#allocation5], 1
    %s2207 = scalar_lea.sflag [#allocation5], 1
    %2208 = vsyncpa %s2207, 1
    %2209 = vsyncpa [#allocation7], 1

</llo_original>
